<compile_context>
chip_gen: v7x
topology: tpu7x:2x2x1
jax: 0.10.0
libtpu: 0.0.40
codegen_flags: <defaults>
</compile_context>

<pallas_src>
import functools

import jax
import jax.numpy as jnp
from jax.experimental import pallas as pl
from jax.experimental.pallas import tpu as pltpu


# ----------------------------------------------------------------------------
# Fused Pallas kernel: all GCN layers + MLP readout in one invocation
# ----------------------------------------------------------------------------
def fused_gcn_net_kernel(*refs, n_layers, batch_norm, residual_flags, eps):
    """refs layout:
        a_ref                 [N, N]      bf16  (normalized adjacency)
        h_ref                 [N, H]      f32   (embedded node features)
        per layer l in range(n_layers):
            w_ref             [Din, Dout] bf16
            b_ref             [1, Dout]   f32   (unused when batch_norm)
            gamma_ref         [1, Dout]   f32
            beta_ref          [1, Dout]   f32
        mlp: w1,w2,w3p        bf16 ; b1,b2,b3p  f32  (w3/b3 lane-padded to 128)
        o_ref                 [N, Cpad]   f32   (output, lane-dense)
    """
    it = iter(refs)
    a_ref = next(it)
    h_ref = next(it)
    layer_refs = [tuple(next(it) for _ in range(4)) for _ in range(n_layers)]
    w1_ref, b1_ref, w2_ref, b2_ref, w3_ref, b3_ref = (next(it) for _ in range(6))
    o_ref = next(it)

    a_bf = a_ref[...]                          # bf16, resident for all layers
    h = h_ref[...]                             # f32 [N, H]
    inv_n = 1.0 / float(h.shape[0])

    # ---- GCN layers (unrolled at trace time; H never leaves VMEM) ----------
    for li, (w_ref, b_ref, g_ref, bt_ref) in enumerate(layer_refs):
        # h W  then  A_norm (h W)  -- bf16 operands, f32 MXU accumulation
        xw = jnp.dot(h.astype(jnp.bfloat16), w_ref[...],
                     preferred_element_type=jnp.float32)          # [N, Dout]
        agg = jnp.dot(a_bf, xw.astype(jnp.bfloat16),
                      preferred_element_type=jnp.float32)         # [N, Dout]

        if batch_norm:
            # single-pass batch-stat BN folded into one scale/shift;
            # conv bias is cancelled by the mean subtraction -> skipped.
            mean = jnp.sum(agg, axis=0, keepdims=True) * inv_n
            mean_sq = jnp.sum(agg * agg, axis=0, keepdims=True) * inv_n
            var = mean_sq - mean * mean
            scale = g_ref[...] * jax.lax.rsqrt(var + eps)
            agg = agg * scale + (bt_ref[...] - mean * scale)
        else:
            agg = agg + b_ref[...]

        act = jnp.maximum(agg, 0.0)            # F.relu
        if residual_flags[li]:
            h = h + act                        # residual (f32)
        else:
            h = act
        # dropout: identity (eval mode)

    # ---- MLPReadout (L=2): FC -> relu -> FC -> relu -> FC ------------------
    y = jnp.dot(h.astype(jnp.bfloat16), w1_ref[...],
                preferred_element_type=jnp.float32) + b1_ref[...]
    y = jnp.maximum(y, 0.0)
    y = jnp.dot(y.astype(jnp.bfloat16), w2_ref[...],
                preferred_element_type=jnp.float32) + b2_ref[...]
    y = jnp.maximum(y, 0.0)
    o_ref[...] = jnp.dot(y.astype(jnp.bfloat16), w3_ref[...],
                         preferred_element_type=jnp.float32) + b3_ref[...]


def _full_spec(shape):
    # whole array as one block (single grid point)
    return pl.BlockSpec(shape, lambda i: (0,) * len(shape))


def gcn_net_forward(params, a_norm, node_ids, *, batch_norm=True,
                    residual=True, eps=1e-5):
    """Full GCNNet forward: embedding (glue) + one fused Pallas kernel."""
    # embedding lookup (glue) + in_feat_dropout (eval -> identity)
    h0 = jnp.take(params["embedding"], node_ids, axis=0)          # [N, H] f32
    n = h0.shape[0]

    layers = params["layers"]
    n_layers = len(layers)
    residual_flags = tuple(
        bool(residual) and (w.shape[0] == w.shape[1])              # GCNLayer rule
        for (w, _, _, _) in layers)

    (w1, b1), (w2, b2), (w3, b3) = params["mlp"]
    n_classes = w3.shape[1]
    # lane-dense output: pad the class dim up to a multiple of 128
    c_pad = ((n_classes + 127) // 128) * 128
    w3p = jnp.zeros((w3.shape[0], c_pad), jnp.float32).at[:, :n_classes].set(w3)
    b3p = jnp.zeros((1, c_pad), jnp.float32).at[:, :n_classes].set(b3)

    # bf16 matmul operands prepared on the host: MXU-native and half the DMA
    a_bf16 = a_norm.astype(jnp.bfloat16)

    inputs = [a_bf16, h0]
    in_specs = [_full_spec(a_bf16.shape), _full_spec(h0.shape)]
    for (w, b, g, bt) in layers:
        for arr in (w.astype(jnp.bfloat16), b, g, bt):
            inputs.append(arr)
            in_specs.append(_full_spec(arr.shape))
    for arr in (w1.astype(jnp.bfloat16), b1,
                w2.astype(jnp.bfloat16), b2,
                w3p.astype(jnp.bfloat16), b3p):
        inputs.append(arr)
        in_specs.append(_full_spec(arr.shape))

    kernel = functools.partial(
        fused_gcn_net_kernel,
        n_layers=n_layers,
        batch_norm=batch_norm,
        residual_flags=residual_flags,
        eps=eps,
    )

    out_padded = pl.pallas_call(
        kernel,
        out_shape=jax.ShapeDtypeStruct((n, c_pad), jnp.float32),
        grid=(1,),
        in_specs=in_specs,
        out_specs=pl.BlockSpec((n, c_pad), lambda i: (0, 0)),
        compiler_params=pltpu.CompilerParams(
            dimension_semantics=("arbitrary",)),
    )(*inputs)

    return out_padded[:, :n_classes]


# ----------------------------------------------------------------------------
# Pure-JAX reference (same bf16 matmul operands) for a loose correctness check
# ----------------------------------------------------------------------------
def gcn_net_reference(params, a_norm, node_ids, *, batch_norm=True,
                      residual=True, eps=1e-5):
    h = jnp.take(params["embedding"], node_ids, axis=0)
    a_bf = a_norm.astype(jnp.bfloat16)
    n = h.shape[0]
    for (w, b, g, bt) in params["layers"]:
        xw = jnp.dot(h.astype(jnp.bfloat16), w.astype(jnp.bfloat16),
                     preferred_element_type=jnp.float32)
        agg = jnp.dot(a_bf, xw.astype(jnp.bfloat16),
                      preferred_element_type=jnp.float32)
        if batch_norm:
            mean = jnp.mean(agg, axis=0, keepdims=True)
            var = jnp.mean(agg * agg, axis=0, keepdims=True) - mean * mean
            agg = (agg - mean) * (g * jax.lax.rsqrt(var + eps)) + bt
        else:
            agg = agg + b
        act = jnp.maximum(agg, 0.0)
        h = h + act if (residual and w.shape[0] == w.shape[1]) else act
    (w1, b1), (w2, b2), (w3, b3) = params["mlp"]
    y = jnp.maximum(jnp.dot(h.astype(jnp.bfloat16), w1.astype(jnp.bfloat16),
                            preferred_element_type=jnp.float32) + b1, 0.0)
    y = jnp.maximum(jnp.dot(y.astype(jnp.bfloat16), w2.astype(jnp.bfloat16),
                            preferred_element_type=jnp.float32) + b2, 0.0)
    return jnp.dot(y.astype(jnp.bfloat16), w3.astype(jnp.bfloat16),
                   preferred_element_type=jnp.float32) + b3


# ----------------------------------------------------------------------------
# Parameter init (deterministic, mirrors nn.Embedding / nn.Linear /
# nn.BatchNorm1d default shapes)
# ----------------------------------------------------------------------------
def _linear_init(key, fan_in, fan_out):
    kw, kb = jax.random.split(key)
    bound = 1.0 / jnp.sqrt(float(fan_in))
    w = jax.random.uniform(kw, (fan_in, fan_out), jnp.float32, -bound, bound)
    b = jax.random.uniform(kb, (1, fan_out), jnp.float32, -bound, bound)
    return w, b


def init_gcn_net_params(key, in_dim_node, hidden_dim, out_dim, n_classes,
                        n_layers):
    keys = jax.random.split(key, n_layers + 5)
    params = {}
    # nn.Embedding(in_dim_node, hidden_dim) ~ N(0, 1)
    params["embedding"] = jax.random.normal(
        keys[0], (in_dim_node, hidden_dim), jnp.float32)

    layer_dims = [(hidden_dim, hidden_dim)] * (n_layers - 1) + \
                 [(hidden_dim, out_dim)]
    layers = []
    for li, (din, dout) in enumerate(layer_dims):
        w, b = _linear_init(keys[1 + li], din, dout)
        gamma = jnp.ones((1, dout), jnp.float32)
        beta = jnp.zeros((1, dout), jnp.float32)
        layers.append((w, b, gamma, beta))
    params["layers"] = layers

    # MLPReadout(out_dim, n_classes), L=2
    d0, d1, d2 = out_dim, out_dim // 2, out_dim // 4
    params["mlp"] = (
        _linear_init(keys[n_layers + 1], d0, d1),
        _linear_init(keys[n_layers + 2], d1, d2),
        _linear_init(keys[n_layers + 3], d2, n_classes),
    )
    return params


# ----------------------------------------------------------------------------
# Graph construction helper
# ----------------------------------------------------------------------------
def build_normalized_adjacency(key, n_nodes, p_edge=0.1):
    """Random symmetric graph with self-loops, symmetric normalization."""
    probs = jax.random.uniform(key, (n_nodes, n_nodes))
    adj = (probs < p_edge).astype(jnp.float32)
    adj = jnp.maximum(adj, adj.T)
    idx = jnp.arange(n_nodes)
    adj = adj.at[idx, idx].set(1.0)
    deg = adj.sum(axis=1)
    d_inv_sqrt = jax.lax.rsqrt(jnp.maximum(deg, 1.0))
    return adj * d_inv_sqrt[:, None] * d_inv_sqrt[None, :]


# ----------------------------------------------------------------------------
if __name__ == "__main__":
    # SBM-style small config
    N_NODES = 128
    IN_DIM_NODE = 8       # node "vocabulary" size (input node labels)
    HIDDEN_DIM = 64
    OUT_DIM = 64
    N_CLASSES = 6
    N_LAYERS = 4          # net_params['L']

    key = jax.random.PRNGKey(0)
    k_graph, k_ids, k_params = jax.random.split(key, 3)

    a_norm = build_normalized_adjacency(k_graph, N_NODES)
    node_ids = jax.random.randint(k_ids, (N_NODES,), 0, IN_DIM_NODE)
    params = init_gcn_net_params(k_params, IN_DIM_NODE, HIDDEN_DIM, OUT_DIM,
                                 N_CLASSES, N_LAYERS)

    # TODO(synk): to fill the 256-wide v6e/v7x MXU and v7x's second TensorCore,
    # batch multiple SBM graphs (block-diagonal A_norm / leading "parallel"
    # grid axis); a single small graph stays latency-bound by construction.
    logits = gcn_net_forward(params, a_norm, node_ids)
    logits = jax.block_until_ready(logits)

    assert logits.shape == (N_NODES, N_CLASSES), logits.shape
    assert jnp.all(jnp.isfinite(logits))

    # loose sanity check against a pure-JAX reference using the same bf16 math
    ref = jax.block_until_ready(gcn_net_reference(params, a_norm, node_ids))
    assert jnp.allclose(logits, ref, rtol=1e-1, atol=1e-1), (
        float(jnp.max(jnp.abs(logits - ref))))

    print("KERNEL_OK")
</pallas_src>

<mosaic_0001>
module attributes {stable_mosaic.version = 11 : i64} {
  func.func @fused_gcn_net_kernel(%arg0: i32, %arg1: memref<128x128xbf16, #tpu.memory_space<vmem>>, %arg2: memref<128x64xf32, #tpu.memory_space<vmem>>, %arg3: memref<64x64xbf16, #tpu.memory_space<vmem>>, %arg4: memref<1x64xf32, #tpu.memory_space<vmem>>, %arg5: memref<1x64xf32, #tpu.memory_space<vmem>>, %arg6: memref<1x64xf32, #tpu.memory_space<vmem>>, %arg7: memref<64x64xbf16, #tpu.memory_space<vmem>>, %arg8: memref<1x64xf32, #tpu.memory_space<vmem>>, %arg9: memref<1x64xf32, #tpu.memory_space<vmem>>, %arg10: memref<1x64xf32, #tpu.memory_space<vmem>>, %arg11: memref<64x64xbf16, #tpu.memory_space<vmem>>, %arg12: memref<1x64xf32, #tpu.memory_space<vmem>>, %arg13: memref<1x64xf32, #tpu.memory_space<vmem>>, %arg14: memref<1x64xf32, #tpu.memory_space<vmem>>, %arg15: memref<64x64xbf16, #tpu.memory_space<vmem>>, %arg16: memref<1x64xf32, #tpu.memory_space<vmem>>, %arg17: memref<1x64xf32, #tpu.memory_space<vmem>>, %arg18: memref<1x64xf32, #tpu.memory_space<vmem>>, %arg19: memref<64x32xbf16, #tpu.memory_space<vmem>>, %arg20: memref<1x32xf32, #tpu.memory_space<vmem>>, %arg21: memref<32x16xbf16, #tpu.memory_space<vmem>>, %arg22: memref<1x16xf32, #tpu.memory_space<vmem>>, %arg23: memref<16x128xbf16, #tpu.memory_space<vmem>>, %arg24: memref<1x128xf32, #tpu.memory_space<vmem>>, %arg25: memref<128x128xf32, #tpu.memory_space<vmem>>) attributes {dimension_semantics = [#tpu.dimension_semantics<arbitrary>], iteration_bounds = array<i64: 1>, scalar_prefetch = 0 : i64, scratch_operands = 0 : i64, tpu.core_type = #tpu.core_type<tc>, window_params = [{pipeline_mode = #tpu.pipeline_mode<synchronous>, transform_indices = @transform_0, window_bounds = array<i64: 128, 128>}, {pipeline_mode = #tpu.pipeline_mode<synchronous>, transform_indices = @transform_1, window_bounds = array<i64: 128, 64>}, {pipeline_mode = #tpu.pipeline_mode<synchronous>, transform_indices = @transform_2, window_bounds = array<i64: 64, 64>}, {pipeline_mode = #tpu.pipeline_mode<synchronous>, transform_indices = @transform_3, window_bounds = array<i64: 1, 64>}, {pipeline_mode = #tpu.pipeline_mode<synchronous>, transform_indices = @transform_4, window_bounds = array<i64: 1, 64>}, {pipeline_mode = #tpu.pipeline_mode<synchronous>, transform_indices = @transform_5, window_bounds = array<i64: 1, 64>}, {pipeline_mode = #tpu.pipeline_mode<synchronous>, transform_indices = @transform_6, window_bounds = array<i64: 64, 64>}, {pipeline_mode = #tpu.pipeline_mode<synchronous>, transform_indices = @transform_7, window_bounds = array<i64: 1, 64>}, {pipeline_mode = #tpu.pipeline_mode<synchronous>, transform_indices = @transform_8, window_bounds = array<i64: 1, 64>}, {pipeline_mode = #tpu.pipeline_mode<synchronous>, transform_indices = @transform_9, window_bounds = array<i64: 1, 64>}, {pipeline_mode = #tpu.pipeline_mode<synchronous>, transform_indices = @transform_10, window_bounds = array<i64: 64, 64>}, {pipeline_mode = #tpu.pipeline_mode<synchronous>, transform_indices = @transform_11, window_bounds = array<i64: 1, 64>}, {pipeline_mode = #tpu.pipeline_mode<synchronous>, transform_indices = @transform_12, window_bounds = array<i64: 1, 64>}, {pipeline_mode = #tpu.pipeline_mode<synchronous>, transform_indices = @transform_13, window_bounds = array<i64: 1, 64>}, {pipeline_mode = #tpu.pipeline_mode<synchronous>, transform_indices = @transform_14, window_bounds = array<i64: 64, 64>}, {pipeline_mode = #tpu.pipeline_mode<synchronous>, transform_indices = @transform_15, window_bounds = array<i64: 1, 64>}, {pipeline_mode = #tpu.pipeline_mode<synchronous>, transform_indices = @transform_16, window_bounds = array<i64: 1, 64>}, {pipeline_mode = #tpu.pipeline_mode<synchronous>, transform_indices = @transform_17, window_bounds = array<i64: 1, 64>}, {pipeline_mode = #tpu.pipeline_mode<synchronous>, transform_indices = @transform_18, window_bounds = array<i64: 64, 32>}, {pipeline_mode = #tpu.pipeline_mode<synchronous>, transform_indices = @transform_19, window_bounds = array<i64: 1, 32>}, {pipeline_mode = #tpu.pipeline_mode<synchronous>, transform_indices = @transform_20, window_bounds = array<i64: 32, 16>}, {pipeline_mode = #tpu.pipeline_mode<synchronous>, transform_indices = @transform_21, window_bounds = array<i64: 1, 16>}, {pipeline_mode = #tpu.pipeline_mode<synchronous>, transform_indices = @transform_22, window_bounds = array<i64: 16, 128>}, {pipeline_mode = #tpu.pipeline_mode<synchronous>, transform_indices = @transform_23, window_bounds = array<i64: 1, 128>}, {pipeline_mode = #tpu.pipeline_mode<synchronous>, transform_indices = @transform_24, window_bounds = array<i64: 128, 128>}]} {
    %c0 = arith.constant 0 : index
    %c0_0 = arith.constant 0 : index
    %0 = vector.load %arg1[%c0, %c0_0] : memref<128x128xbf16, #tpu.memory_space<vmem>>, vector<128x128xbf16>
    %c0_1 = arith.constant 0 : index
    %c0_2 = arith.constant 0 : index
    %1 = vector.load %arg2[%c0_1, %c0_2] : memref<128x64xf32, #tpu.memory_space<vmem>>, vector<128x64xf32>
    %2 = arith.truncf %1 : vector<128x64xf32> to vector<128x64xbf16>
    %c0_3 = arith.constant 0 : index
    %c0_4 = arith.constant 0 : index
    %3 = vector.load %arg3[%c0_3, %c0_4] : memref<64x64xbf16, #tpu.memory_space<vmem>>, vector<64x64xbf16>
    %cst = arith.constant dense<0.000000e+00> : vector<128x64xf32>
    %4 = tpu.matmul %2, %3, %cst {dimension_numbers = #tpu.dot_dimension_numbers<[1], [0], [0], [1], [0, 0, 1, 1], [], []>} : vector<128x64xbf16>, vector<64x64xbf16>, vector<128x64xf32> -> vector<128x64xf32>
    %5 = arith.truncf %4 : vector<128x64xf32> to vector<128x64xbf16>
    %cst_5 = arith.constant dense<0.000000e+00> : vector<128x64xf32>
    %6 = tpu.matmul %0, %5, %cst_5 {dimension_numbers = #tpu.dot_dimension_numbers<[1], [0], [0], [1], [0, 0, 1, 1], [], []>} : vector<128x128xbf16>, vector<128x64xbf16>, vector<128x64xf32> -> vector<128x64xf32>
    %cst_6 = arith.constant dense<0.000000e+00> : vector<64xf32>
    %7 = vector.multi_reduction <add>, %6, %cst_6 [0] : vector<128x64xf32> to vector<64xf32>
    %8 = vector.shape_cast %7 : vector<64xf32> to vector<1x64xf32>
    %cst_7 = arith.constant 7.812500e-03 : f32
    %9 = vector.broadcast %cst_7 : f32 to vector<1x64xf32>
    %10 = arith.mulf %8, %9 : vector<1x64xf32>
    %11 = arith.mulf %6, %6 : vector<128x64xf32>
    %cst_8 = arith.constant dense<0.000000e+00> : vector<64xf32>
    %12 = vector.multi_reduction <add>, %11, %cst_8 [0] : vector<128x64xf32> to vector<64xf32>
    %13 = vector.shape_cast %12 : vector<64xf32> to vector<1x64xf32>
    %cst_9 = arith.constant 7.812500e-03 : f32
    %14 = vector.broadcast %cst_9 : f32 to vector<1x64xf32>
    %15 = arith.mulf %13, %14 : vector<1x64xf32>
    %16 = arith.mulf %10, %10 : vector<1x64xf32>
    %17 = arith.subf %15, %16 : vector<1x64xf32>
    %c0_10 = arith.constant 0 : index
    %c0_11 = arith.constant 0 : index
    %18 = vector.load %arg5[%c0_10, %c0_11] : memref<1x64xf32, #tpu.memory_space<vmem>>, vector<1x64xf32>
    %cst_12 = arith.constant 9.99999974E-6 : f32
    %19 = vector.broadcast %cst_12 : f32 to vector<1x64xf32>
    %20 = arith.addf %17, %19 : vector<1x64xf32>
    %21 = math.rsqrt %20 : vector<1x64xf32>
    %22 = arith.mulf %18, %21 : vector<1x64xf32>
    %23 = vector.broadcast %22 : vector<1x64xf32> to vector<128x64xf32>
    %24 = arith.mulf %6, %23 : vector<128x64xf32>
    %c0_13 = arith.constant 0 : index
    %c0_14 = arith.constant 0 : index
    %25 = vector.load %arg6[%c0_13, %c0_14] : memref<1x64xf32, #tpu.memory_space<vmem>>, vector<1x64xf32>
    %26 = arith.mulf %10, %22 : vector<1x64xf32>
    %27 = arith.subf %25, %26 : vector<1x64xf32>
    %28 = vector.broadcast %27 : vector<1x64xf32> to vector<128x64xf32>
    %29 = arith.addf %24, %28 : vector<128x64xf32>
    %cst_15 = arith.constant 0.000000e+00 : f32
    %30 = vector.broadcast %cst_15 : f32 to vector<128x64xf32>
    %31 = arith.maximumf %29, %30 : vector<128x64xf32>
    %32 = arith.addf %1, %31 : vector<128x64xf32>
    %33 = arith.truncf %32 : vector<128x64xf32> to vector<128x64xbf16>
    %c0_16 = arith.constant 0 : index
    %c0_17 = arith.constant 0 : index
    %34 = vector.load %arg7[%c0_16, %c0_17] : memref<64x64xbf16, #tpu.memory_space<vmem>>, vector<64x64xbf16>
    %cst_18 = arith.constant dense<0.000000e+00> : vector<128x64xf32>
    %35 = tpu.matmul %33, %34, %cst_18 {dimension_numbers = #tpu.dot_dimension_numbers<[1], [0], [0], [1], [0, 0, 1, 1], [], []>} : vector<128x64xbf16>, vector<64x64xbf16>, vector<128x64xf32> -> vector<128x64xf32>
    %36 = arith.truncf %35 : vector<128x64xf32> to vector<128x64xbf16>
    %cst_19 = arith.constant dense<0.000000e+00> : vector<128x64xf32>
    %37 = tpu.matmul %0, %36, %cst_19 {dimension_numbers = #tpu.dot_dimension_numbers<[1], [0], [0], [1], [0, 0, 1, 1], [], []>} : vector<128x128xbf16>, vector<128x64xbf16>, vector<128x64xf32> -> vector<128x64xf32>
    %cst_20 = arith.constant dense<0.000000e+00> : vector<64xf32>
    %38 = vector.multi_reduction <add>, %37, %cst_20 [0] : vector<128x64xf32> to vector<64xf32>
    %39 = vector.shape_cast %38 : vector<64xf32> to vector<1x64xf32>
    %cst_21 = arith.constant 7.812500e-03 : f32
    %40 = vector.broadcast %cst_21 : f32 to vector<1x64xf32>
    %41 = arith.mulf %39, %40 : vector<1x64xf32>
    %42 = arith.mulf %37, %37 : vector<128x64xf32>
    %cst_22 = arith.constant dense<0.000000e+00> : vector<64xf32>
    %43 = vector.multi_reduction <add>, %42, %cst_22 [0] : vector<128x64xf32> to vector<64xf32>
    %44 = vector.shape_cast %43 : vector<64xf32> to vector<1x64xf32>
    %cst_23 = arith.constant 7.812500e-03 : f32
    %45 = vector.broadcast %cst_23 : f32 to vector<1x64xf32>
    %46 = arith.mulf %44, %45 : vector<1x64xf32>
    %47 = arith.mulf %41, %41 : vector<1x64xf32>
    %48 = arith.subf %46, %47 : vector<1x64xf32>
    %c0_24 = arith.constant 0 : index
    %c0_25 = arith.constant 0 : index
    %49 = vector.load %arg9[%c0_24, %c0_25] : memref<1x64xf32, #tpu.memory_space<vmem>>, vector<1x64xf32>
    %cst_26 = arith.constant 9.99999974E-6 : f32
    %50 = vector.broadcast %cst_26 : f32 to vector<1x64xf32>
    %51 = arith.addf %48, %50 : vector<1x64xf32>
    %52 = math.rsqrt %51 : vector<1x64xf32>
    %53 = arith.mulf %49, %52 : vector<1x64xf32>
    %54 = vector.broadcast %53 : vector<1x64xf32> to vector<128x64xf32>
    %55 = arith.mulf %37, %54 : vector<128x64xf32>
    %c0_27 = arith.constant 0 : index
    %c0_28 = arith.constant 0 : index
    %56 = vector.load %arg10[%c0_27, %c0_28] : memref<1x64xf32, #tpu.memory_space<vmem>>, vector<1x64xf32>
    %57 = arith.mulf %41, %53 : vector<1x64xf32>
    %58 = arith.subf %56, %57 : vector<1x64xf32>
    %59 = vector.broadcast %58 : vector<1x64xf32> to vector<128x64xf32>
    %60 = arith.addf %55, %59 : vector<128x64xf32>
    %cst_29 = arith.constant 0.000000e+00 : f32
    %61 = vector.broadcast %cst_29 : f32 to vector<128x64xf32>
    %62 = arith.maximumf %60, %61 : vector<128x64xf32>
    %63 = arith.addf %32, %62 : vector<128x64xf32>
    %64 = arith.truncf %63 : vector<128x64xf32> to vector<128x64xbf16>
    %c0_30 = arith.constant 0 : index
    %c0_31 = arith.constant 0 : index
    %65 = vector.load %arg11[%c0_30, %c0_31] : memref<64x64xbf16, #tpu.memory_space<vmem>>, vector<64x64xbf16>
    %cst_32 = arith.constant dense<0.000000e+00> : vector<128x64xf32>
    %66 = tpu.matmul %64, %65, %cst_32 {dimension_numbers = #tpu.dot_dimension_numbers<[1], [0], [0], [1], [0, 0, 1, 1], [], []>} : vector<128x64xbf16>, vector<64x64xbf16>, vector<128x64xf32> -> vector<128x64xf32>
    %67 = arith.truncf %66 : vector<128x64xf32> to vector<128x64xbf16>
    %cst_33 = arith.constant dense<0.000000e+00> : vector<128x64xf32>
    %68 = tpu.matmul %0, %67, %cst_33 {dimension_numbers = #tpu.dot_dimension_numbers<[1], [0], [0], [1], [0, 0, 1, 1], [], []>} : vector<128x128xbf16>, vector<128x64xbf16>, vector<128x64xf32> -> vector<128x64xf32>
    %cst_34 = arith.constant dense<0.000000e+00> : vector<64xf32>
    %69 = vector.multi_reduction <add>, %68, %cst_34 [0] : vector<128x64xf32> to vector<64xf32>
    %70 = vector.shape_cast %69 : vector<64xf32> to vector<1x64xf32>
    %cst_35 = arith.constant 7.812500e-03 : f32
    %71 = vector.broadcast %cst_35 : f32 to vector<1x64xf32>
    %72 = arith.mulf %70, %71 : vector<1x64xf32>
    %73 = arith.mulf %68, %68 : vector<128x64xf32>
    %cst_36 = arith.constant dense<0.000000e+00> : vector<64xf32>
    %74 = vector.multi_reduction <add>, %73, %cst_36 [0] : vector<128x64xf32> to vector<64xf32>
    %75 = vector.shape_cast %74 : vector<64xf32> to vector<1x64xf32>
    %cst_37 = arith.constant 7.812500e-03 : f32
    %76 = vector.broadcast %cst_37 : f32 to vector<1x64xf32>
    %77 = arith.mulf %75, %76 : vector<1x64xf32>
    %78 = arith.mulf %72, %72 : vector<1x64xf32>
    %79 = arith.subf %77, %78 : vector<1x64xf32>
    %c0_38 = arith.constant 0 : index
    %c0_39 = arith.constant 0 : index
    %80 = vector.load %arg13[%c0_38, %c0_39] : memref<1x64xf32, #tpu.memory_space<vmem>>, vector<1x64xf32>
    %cst_40 = arith.constant 9.99999974E-6 : f32
    %81 = vector.broadcast %cst_40 : f32 to vector<1x64xf32>
    %82 = arith.addf %79, %81 : vector<1x64xf32>
    %83 = math.rsqrt %82 : vector<1x64xf32>
    %84 = arith.mulf %80, %83 : vector<1x64xf32>
    %85 = vector.broadcast %84 : vector<1x64xf32> to vector<128x64xf32>
    %86 = arith.mulf %68, %85 : vector<128x64xf32>
    %c0_41 = arith.constant 0 : index
    %c0_42 = arith.constant 0 : index
    %87 = vector.load %arg14[%c0_41, %c0_42] : memref<1x64xf32, #tpu.memory_space<vmem>>, vector<1x64xf32>
    %88 = arith.mulf %72, %84 : vector<1x64xf32>
    %89 = arith.subf %87, %88 : vector<1x64xf32>
    %90 = vector.broadcast %89 : vector<1x64xf32> to vector<128x64xf32>
    %91 = arith.addf %86, %90 : vector<128x64xf32>
    %cst_43 = arith.constant 0.000000e+00 : f32
    %92 = vector.broadcast %cst_43 : f32 to vector<128x64xf32>
    %93 = arith.maximumf %91, %92 : vector<128x64xf32>
    %94 = arith.addf %63, %93 : vector<128x64xf32>
    %95 = arith.truncf %94 : vector<128x64xf32> to vector<128x64xbf16>
    %c0_44 = arith.constant 0 : index
    %c0_45 = arith.constant 0 : index
    %96 = vector.load %arg15[%c0_44, %c0_45] : memref<64x64xbf16, #tpu.memory_space<vmem>>, vector<64x64xbf16>
    %cst_46 = arith.constant dense<0.000000e+00> : vector<128x64xf32>
    %97 = tpu.matmul %95, %96, %cst_46 {dimension_numbers = #tpu.dot_dimension_numbers<[1], [0], [0], [1], [0, 0, 1, 1], [], []>} : vector<128x64xbf16>, vector<64x64xbf16>, vector<128x64xf32> -> vector<128x64xf32>
    %98 = arith.truncf %97 : vector<128x64xf32> to vector<128x64xbf16>
    %cst_47 = arith.constant dense<0.000000e+00> : vector<128x64xf32>
    %99 = tpu.matmul %0, %98, %cst_47 {dimension_numbers = #tpu.dot_dimension_numbers<[1], [0], [0], [1], [0, 0, 1, 1], [], []>} : vector<128x128xbf16>, vector<128x64xbf16>, vector<128x64xf32> -> vector<128x64xf32>
    %cst_48 = arith.constant dense<0.000000e+00> : vector<64xf32>
    %100 = vector.multi_reduction <add>, %99, %cst_48 [0] : vector<128x64xf32> to vector<64xf32>
    %101 = vector.shape_cast %100 : vector<64xf32> to vector<1x64xf32>
    %cst_49 = arith.constant 7.812500e-03 : f32
    %102 = vector.broadcast %cst_49 : f32 to vector<1x64xf32>
    %103 = arith.mulf %101, %102 : vector<1x64xf32>
    %104 = arith.mulf %99, %99 : vector<128x64xf32>
    %cst_50 = arith.constant dense<0.000000e+00> : vector<64xf32>
    %105 = vector.multi_reduction <add>, %104, %cst_50 [0] : vector<128x64xf32> to vector<64xf32>
    %106 = vector.shape_cast %105 : vector<64xf32> to vector<1x64xf32>
    %cst_51 = arith.constant 7.812500e-03 : f32
    %107 = vector.broadcast %cst_51 : f32 to vector<1x64xf32>
    %108 = arith.mulf %106, %107 : vector<1x64xf32>
    %109 = arith.mulf %103, %103 : vector<1x64xf32>
    %110 = arith.subf %108, %109 : vector<1x64xf32>
    %c0_52 = arith.constant 0 : index
    %c0_53 = arith.constant 0 : index
    %111 = vector.load %arg17[%c0_52, %c0_53] : memref<1x64xf32, #tpu.memory_space<vmem>>, vector<1x64xf32>
    %cst_54 = arith.constant 9.99999974E-6 : f32
    %112 = vector.broadcast %cst_54 : f32 to vector<1x64xf32>
    %113 = arith.addf %110, %112 : vector<1x64xf32>
    %114 = math.rsqrt %113 : vector<1x64xf32>
    %115 = arith.mulf %111, %114 : vector<1x64xf32>
    %116 = vector.broadcast %115 : vector<1x64xf32> to vector<128x64xf32>
    %117 = arith.mulf %99, %116 : vector<128x64xf32>
    %c0_55 = arith.constant 0 : index
    %c0_56 = arith.constant 0 : index
    %118 = vector.load %arg18[%c0_55, %c0_56] : memref<1x64xf32, #tpu.memory_space<vmem>>, vector<1x64xf32>
    %119 = arith.mulf %103, %115 : vector<1x64xf32>
    %120 = arith.subf %118, %119 : vector<1x64xf32>
    %121 = vector.broadcast %120 : vector<1x64xf32> to vector<128x64xf32>
    %122 = arith.addf %117, %121 : vector<128x64xf32>
    %cst_57 = arith.constant 0.000000e+00 : f32
    %123 = vector.broadcast %cst_57 : f32 to vector<128x64xf32>
    %124 = arith.maximumf %122, %123 : vector<128x64xf32>
    %125 = arith.addf %94, %124 : vector<128x64xf32>
    %126 = arith.truncf %125 : vector<128x64xf32> to vector<128x64xbf16>
    %c0_58 = arith.constant 0 : index
    %c0_59 = arith.constant 0 : index
    %127 = vector.load %arg19[%c0_58, %c0_59] : memref<64x32xbf16, #tpu.memory_space<vmem>>, vector<64x32xbf16>
    %cst_60 = arith.constant dense<0.000000e+00> : vector<128x32xf32>
    %128 = tpu.matmul %126, %127, %cst_60 {dimension_numbers = #tpu.dot_dimension_numbers<[1], [0], [0], [1], [0, 0, 1, 1], [], []>} : vector<128x64xbf16>, vector<64x32xbf16>, vector<128x32xf32> -> vector<128x32xf32>
    %c0_61 = arith.constant 0 : index
    %c0_62 = arith.constant 0 : index
    %129 = vector.load %arg20[%c0_61, %c0_62] : memref<1x32xf32, #tpu.memory_space<vmem>>, vector<1x32xf32>
    %130 = vector.broadcast %129 : vector<1x32xf32> to vector<128x32xf32>
    %131 = arith.addf %128, %130 : vector<128x32xf32>
    %cst_63 = arith.constant 0.000000e+00 : f32
    %132 = vector.broadcast %cst_63 : f32 to vector<128x32xf32>
    %133 = arith.maximumf %131, %132 : vector<128x32xf32>
    %134 = arith.truncf %133 : vector<128x32xf32> to vector<128x32xbf16>
    %c0_64 = arith.constant 0 : index
    %c0_65 = arith.constant 0 : index
    %135 = vector.load %arg21[%c0_64, %c0_65] : memref<32x16xbf16, #tpu.memory_space<vmem>>, vector<32x16xbf16>
    %cst_66 = arith.constant dense<0.000000e+00> : vector<128x16xf32>
    %136 = tpu.matmul %134, %135, %cst_66 {dimension_numbers = #tpu.dot_dimension_numbers<[1], [0], [0], [1], [0, 0, 1, 1], [], []>} : vector<128x32xbf16>, vector<32x16xbf16>, vector<128x16xf32> -> vector<128x16xf32>
    %c0_67 = arith.constant 0 : index
    %c0_68 = arith.constant 0 : index
    %137 = vector.load %arg22[%c0_67, %c0_68] : memref<1x16xf32, #tpu.memory_space<vmem>>, vector<1x16xf32>
    %138 = vector.broadcast %137 : vector<1x16xf32> to vector<128x16xf32>
    %139 = arith.addf %136, %138 : vector<128x16xf32>
    %cst_69 = arith.constant 0.000000e+00 : f32
    %140 = vector.broadcast %cst_69 : f32 to vector<128x16xf32>
    %141 = arith.maximumf %139, %140 : vector<128x16xf32>
    %142 = arith.truncf %141 : vector<128x16xf32> to vector<128x16xbf16>
    %c0_70 = arith.constant 0 : index
    %c0_71 = arith.constant 0 : index
    %143 = vector.load %arg23[%c0_70, %c0_71] : memref<16x128xbf16, #tpu.memory_space<vmem>>, vector<16x128xbf16>
    %cst_72 = arith.constant dense<0.000000e+00> : vector<128x128xf32>
    %144 = tpu.matmul %142, %143, %cst_72 {dimension_numbers = #tpu.dot_dimension_numbers<[1], [0], [0], [1], [0, 0, 1, 1], [], []>} : vector<128x16xbf16>, vector<16x128xbf16>, vector<128x128xf32> -> vector<128x128xf32>
    %c0_73 = arith.constant 0 : index
    %c0_74 = arith.constant 0 : index
    %145 = vector.load %arg24[%c0_73, %c0_74] : memref<1x128xf32, #tpu.memory_space<vmem>>, vector<1x128xf32>
    %146 = vector.broadcast %145 : vector<1x128xf32> to vector<128x128xf32>
    %147 = arith.addf %144, %146 : vector<128x128xf32>
    %c0_75 = arith.constant 0 : index
    %c0_76 = arith.constant 0 : index
    %148 = vector.load %arg25[%c0_75, %c0_76] : memref<128x128xf32, #tpu.memory_space<vmem>>, vector<128x128xf32>
    tpu.vector_store %arg25[%c0_75, %c0_76], %147 {strides = array<i32>} : memref<128x128xf32, #tpu.memory_space<vmem>>, vector<128x128xf32>,
    return
  }
  func.func @transform_0(%arg0: i32) -> (i32, i32) {
    %c0_i32 = arith.constant 0 : i32
    %c0_i32_0 = arith.constant 0 : i32
    %c0_i32_1 = arith.constant 0 : i32
    return %c0_i32, %c0_i32_0 : i32, i32
  }
  func.func @transform_1(%arg0: i32) -> (i32, i32) {
    %c0_i32 = arith.constant 0 : i32
    %c0_i32_0 = arith.constant 0 : i32
    %c0_i32_1 = arith.constant 0 : i32
    return %c0_i32, %c0_i32_0 : i32, i32
  }
  func.func @transform_2(%arg0: i32) -> (i32, i32) {
    %c0_i32 = arith.constant 0 : i32
    %c0_i32_0 = arith.constant 0 : i32
    %c0_i32_1 = arith.constant 0 : i32
    return %c0_i32, %c0_i32_0 : i32, i32
  }
  func.func @transform_3(%arg0: i32) -> (i32, i32) {
    %c0_i32 = arith.constant 0 : i32
    %c0_i32_0 = arith.constant 0 : i32
    %c0_i32_1 = arith.constant 0 : i32
    return %c0_i32, %c0_i32_0 : i32, i32
  }
  func.func @transform_4(%arg0: i32) -> (i32, i32) {
    %c0_i32 = arith.constant 0 : i32
    %c0_i32_0 = arith.constant 0 : i32
    %c0_i32_1 = arith.constant 0 : i32
    return %c0_i32, %c0_i32_0 : i32, i32
  }
  func.func @transform_5(%arg0: i32) -> (i32, i32) {
    %c0_i32 = arith.constant 0 : i32
    %c0_i32_0 = arith.constant 0 : i32
    %c0_i32_1 = arith.constant 0 : i32
    return %c0_i32, %c0_i32_0 : i32, i32
  }
  func.func @transform_6(%arg0: i32) -> (i32, i32) {
    %c0_i32 = arith.constant 0 : i32
    %c0_i32_0 = arith.constant 0 : i32
    %c0_i32_1 = arith.constant 0 : i32
    return %c0_i32, %c0_i32_0 : i32, i32
  }
  func.func @transform_7(%arg0: i32) -> (i32, i32) {
    %c0_i32 = arith.constant 0 : i32
    %c0_i32_0 = arith.constant 0 : i32
    %c0_i32_1 = arith.constant 0 : i32
    return %c0_i32, %c0_i32_0 : i32, i32
  }
  func.func @transform_8(%arg0: i32) -> (i32, i32) {
    %c0_i32 = arith.constant 0 : i32
    %c0_i32_0 = arith.constant 0 : i32
    %c0_i32_1 = arith.constant 0 : i32
    return %c0_i32, %c0_i32_0 : i32, i32
  }
  func.func @transform_9(%arg0: i32) -> (i32, i32) {
    %c0_i32 = arith.constant 0 : i32
    %c0_i32_0 = arith.constant 0 : i32
    %c0_i32_1 = arith.constant 0 : i32
    return %c0_i32, %c0_i32_0 : i32, i32
  }
  func.func @transform_10(%arg0: i32) -> (i32, i32) {
    %c0_i32 = arith.constant 0 : i32
    %c0_i32_0 = arith.constant 0 : i32
    %c0_i32_1 = arith.constant 0 : i32
    return %c0_i32, %c0_i32_0 : i32, i32
  }
  func.func @transform_11(%arg0: i32) -> (i32, i32) {
    %c0_i32 = arith.constant 0 : i32
    %c0_i32_0 = arith.constant 0 : i32
    %c0_i32_1 = arith.constant 0 : i32
    return %c0_i32, %c0_i32_0 : i32, i32
  }
  func.func @transform_12(%arg0: i32) -> (i32, i32) {
    %c0_i32 = arith.constant 0 : i32
    %c0_i32_0 = arith.constant 0 : i32
    %c0_i32_1 = arith.constant 0 : i32
    return %c0_i32, %c0_i32_0 : i32, i32
  }
  func.func @transform_13(%arg0: i32) -> (i32, i32) {
    %c0_i32 = arith.constant 0 : i32
    %c0_i32_0 = arith.constant 0 : i32
    %c0_i32_1 = arith.constant 0 : i32
    return %c0_i32, %c0_i32_0 : i32, i32
  }
  func.func @transform_14(%arg0: i32) -> (i32, i32) {
    %c0_i32 = arith.constant 0 : i32
    %c0_i32_0 = arith.constant 0 : i32
    %c0_i32_1 = arith.constant 0 : i32
    return %c0_i32, %c0_i32_0 : i32, i32
  }
  func.func @transform_15(%arg0: i32) -> (i32, i32) {
    %c0_i32 = arith.constant 0 : i32
    %c0_i32_0 = arith.constant 0 : i32
    %c0_i32_1 = arith.constant 0 : i32
    return %c0_i32, %c0_i32_0 : i32, i32
  }
  func.func @transform_16(%arg0: i32) -> (i32, i32) {
    %c0_i32 = arith.constant 0 : i32
    %c0_i32_0 = arith.constant 0 : i32
    %c0_i32_1 = arith.constant 0 : i32
    return %c0_i32, %c0_i32_0 : i32, i32
  }
  func.func @transform_17(%arg0: i32) -> (i32, i32) {
    %c0_i32 = arith.constant 0 : i32
    %c0_i32_0 = arith.constant 0 : i32
    %c0_i32_1 = arith.constant 0 : i32
    return %c0_i32, %c0_i32_0 : i32, i32
  }
  func.func @transform_18(%arg0: i32) -> (i32, i32) {
    %c0_i32 = arith.constant 0 : i32
    %c0_i32_0 = arith.constant 0 : i32
    %c0_i32_1 = arith.constant 0 : i32
    return %c0_i32, %c0_i32_0 : i32, i32
  }
  func.func @transform_19(%arg0: i32) -> (i32, i32) {
    %c0_i32 = arith.constant 0 : i32
    %c0_i32_0 = arith.constant 0 : i32
    %c0_i32_1 = arith.constant 0 : i32
    return %c0_i32, %c0_i32_0 : i32, i32
  }
  func.func @transform_20(%arg0: i32) -> (i32, i32) {
    %c0_i32 = arith.constant 0 : i32
    %c0_i32_0 = arith.constant 0 : i32
    %c0_i32_1 = arith.constant 0 : i32
    return %c0_i32, %c0_i32_0 : i32, i32
  }
  func.func @transform_21(%arg0: i32) -> (i32, i32) {
    %c0_i32 = arith.constant 0 : i32
    %c0_i32_0 = arith.constant 0 : i32
    %c0_i32_1 = arith.constant 0 : i32
    return %c0_i32, %c0_i32_0 : i32, i32
  }
  func.func @transform_22(%arg0: i32) -> (i32, i32) {
    %c0_i32 = arith.constant 0 : i32
    %c0_i32_0 = arith.constant 0 : i32
    %c0_i32_1 = arith.constant 0 : i32
    return %c0_i32, %c0_i32_0 : i32, i32
  }
  func.func @transform_23(%arg0: i32) -> (i32, i32) {
    %c0_i32 = arith.constant 0 : i32
    %c0_i32_0 = arith.constant 0 : i32
    %c0_i32_1 = arith.constant 0 : i32
    return %c0_i32, %c0_i32_0 : i32, i32
  }
  func.func @transform_24(%arg0: i32) -> (i32, i32) {
    %c0_i32 = arith.constant 0 : i32
    %c0_i32_0 = arith.constant 0 : i32
    %c0_i32_1 = arith.constant 0 : i32
    return %c0_i32, %c0_i32_0 : i32, i32
  }
}

</mosaic_0001>

<llo_original>
// kernel: tpu_custom_call.1
$region0: #{tpu_custom_call.1}
  #allocation0 [shape = 'u32[]', space=smem, size = 0x4, offset = 0x4, fixed_abs, tag = 'smem constant byte address 0x4 - core index']
  #allocation1 [shape = 'u32[144,128]{1,0:T(1,128)}', space=vmem, size = 0x12000, scoped, tag = 'internal scratch']
  %s0 = inlined_call_operand.vmem [shape: bf16[128,128], index: 0, kind: input, shape index: {}]
  %s1 = inlined_call_operand.vmem [shape: f32[128,64], index: 1, kind: input, shape index: {}]
  %s2 = inlined_call_operand.vmem [shape: bf16[64,64], index: 2, kind: input, shape index: {}]
  %s3 = inlined_call_operand.vmem [shape: f32[1,64], index: 3, kind: input, shape index: {}]
  %s4 = inlined_call_operand.vmem [shape: f32[1,64], index: 4, kind: input, shape index: {}]
  %s5 = inlined_call_operand.hbm [shape: f32[1,64], index: 5, kind: input, shape index: {}]
  %s6 = inlined_call_operand.vmem [shape: bf16[64,64], index: 6, kind: input, shape index: {}]
  %s7 = inlined_call_operand.hbm [shape: f32[1,64], index: 7, kind: input, shape index: {}]
  %s8 = inlined_call_operand.vmem [shape: f32[1,64], index: 8, kind: input, shape index: {}]
  %s9 = inlined_call_operand.vmem [shape: f32[1,64], index: 9, kind: input, shape index: {}]
  %s10 = inlined_call_operand.vmem [shape: bf16[64,64], index: 10, kind: input, shape index: {}]
  %s11 = inlined_call_operand.vmem [shape: f32[1,64], index: 11, kind: input, shape index: {}]
  %s12 = inlined_call_operand.vmem [shape: f32[1,64], index: 12, kind: input, shape index: {}]
  %s13 = inlined_call_operand.vmem [shape: f32[1,64], index: 13, kind: input, shape index: {}]
  %s14 = inlined_call_operand.vmem [shape: bf16[64,64], index: 14, kind: input, shape index: {}]
  %s15 = inlined_call_operand.vmem [shape: f32[1,64], index: 15, kind: input, shape index: {}]
  %s16 = inlined_call_operand.vmem [shape: f32[1,64], index: 16, kind: input, shape index: {}]
  %s17 = inlined_call_operand.vmem [shape: f32[1,64], index: 17, kind: input, shape index: {}]
  %s18 = inlined_call_operand.vmem [shape: bf16[64,32], index: 18, kind: input, shape index: {}]
  %s19 = inlined_call_operand.vmem [shape: f32[1,32], index: 19, kind: input, shape index: {}]
  %s20 = inlined_call_operand.vmem [shape: bf16[32,16], index: 20, kind: input, shape index: {}]
  %s21 = inlined_call_operand.vmem [shape: f32[1,16], index: 21, kind: input, shape index: {}]
  %s22 = inlined_call_operand.vmem [shape: bf16[16,128], index: 22, kind: input, shape index: {}]
  %s23 = inlined_call_operand.vmem [shape: f32[1,128], index: 23, kind: input, shape index: {}]
  %s24 = inlined_call_operand.hbm [shape: f32[128,128], index: 24, kind: output, shape index: {}]
  %s25 = sld [smem:[#allocation0]]
  $region114: #{tpu_custom_call.1} parent=0
    _
  %s27 = ssub.s32 1, %s25
  %s28 = scalar_select 0, %s27, %s25
  $region1: #{tpu_custom_call.1} parent=0
    #allocation2 [shape = 'u8[512]{0}', space=vmem, size = 0x400, scoped, tag = 'input window, operand 5, single buffered']
    #allocation3 [shape = 's32[1]{0}', space=sflag, size = 0x4, scoped, tag = 'scoped memory for tpu_custom_call.1']
    #allocation4 [shape = 's32[1]{0}', space=sflag, size = 0x4, scoped, tag = 'scoped memory for tpu_custom_call.1']
    #allocation5 [shape = 'u8[512]{0}', space=vmem, size = 0x400, scoped, tag = 'input window, operand 7, single buffered']
    #allocation6 [shape = 's32[1]{0}', space=sflag, size = 0x4, scoped, tag = 'scoped memory for tpu_custom_call.1']
    #allocation7 [shape = 'u8[65536]{0}', space=vmem, size = 0x10000, scoped, tag = 'output window, operand 0, single buffered']
    %29 = vsyncpa [#allocation3], 0
    %30 = vsyncpa [#allocation6], 0
    %31 = vsyncpa [#allocation4], 0
    // Predicated region
    $region2: #{tpu_custom_call.1} parent=1 // pred_check
      _
    $region3: #{tpu_custom_call.1} parent=1 // pred_check_branch
      %33 = sbr.rel (0) target = $region5
    $region4: #{tpu_custom_call.1} parent=1 // pred_region
      _
    $region5: #{tpu_custom_call.1} parent=1 // pred_fallthru
      _
    // Predicated region
    $region6: #{tpu_custom_call.1} parent=1 // pred_check
      _
    $region7: #{tpu_custom_call.1} parent=1 // pred_check_branch
      %35 = sbr.rel (0) target = $region9
    $region8: #{tpu_custom_call.1} parent=1 // pred_region
      _
    $region9: #{tpu_custom_call.1} parent=1 // pred_fallthru
      _
    // Predicated region
    $region10: #{tpu_custom_call.1} parent=1 // pred_check
      _
    $region11: #{tpu_custom_call.1} parent=1 // pred_check_branch
      %37 = sbr.rel (0) target = $region13
    $region12: #{tpu_custom_call.1} parent=1 // pred_region
      _
    $region13: #{tpu_custom_call.1} parent=1 // pred_fallthru
      _
    // Predicated region
    $region14: #{tpu_custom_call.1} parent=1 // pred_check
      _
    $region15: #{tpu_custom_call.1} parent=1 // pred_check_branch
      %39 = sbr.rel (0) target = $region17
    $region16: #{tpu_custom_call.1} parent=1 // pred_region
      _
    $region17: #{tpu_custom_call.1} parent=1 // pred_fallthru
      _
    // Predicated region
    $region18: #{tpu_custom_call.1} parent=1 // pred_check
      _
    $region19: #{tpu_custom_call.1} parent=1 // pred_check_branch
      %41 = sbr.rel (0) target = $region21
    $region20: #{tpu_custom_call.1} parent=1 // pred_region
      _
    $region21: #{tpu_custom_call.1} parent=1 // pred_fallthru
      _
    // Predicated region
    $region22: #{tpu_custom_call.1} parent=1 // pred_check
      _
    $region23: #{tpu_custom_call.1} parent=1 // pred_check_branch
      %43 = sbr.rel (0) target = $region25
    $region24: #{tpu_custom_call.1} parent=1 // pred_region
      %s45 = ssub.s32 16, 16
      %46 = vsyncadd [#allocation3], %s45
      %s48 = sshll.u32 [#allocation2], 4
      %s49 = int_to_ptr.vmem [resolvable:$true] %s48
      %51 = dma.hbm_to_vmem [thread:$0]  %s5, 16, %s49, [#allocation3]
    $region25: #{tpu_custom_call.1} parent=1 // pred_fallthru
      _
    // Predicated region
    $region26: #{tpu_custom_call.1} parent=1 // pred_check
      _
    $region27: #{tpu_custom_call.1} parent=1 // pred_check_branch
      %53 = sbr.rel (0) target = $region29
    $region28: #{tpu_custom_call.1} parent=1 // pred_region
      _
    $region29: #{tpu_custom_call.1} parent=1 // pred_fallthru
      _
    // Predicated region
    $region30: #{tpu_custom_call.1} parent=1 // pred_check
      _
    $region31: #{tpu_custom_call.1} parent=1 // pred_check_branch
      %55 = sbr.rel (0) target = $region33
    $region32: #{tpu_custom_call.1} parent=1 // pred_region
      %s57 = ssub.s32 16, 16
      %58 = vsyncadd [#allocation6], %s57
      %s60 = sshll.u32 [#allocation5], 4
      %s61 = int_to_ptr.vmem [resolvable:$true] %s60
      %63 = dma.hbm_to_vmem [thread:$0]  %s7, 16, %s61, [#allocation6]
    $region33: #{tpu_custom_call.1} parent=1 // pred_fallthru
      _
    // Predicated region
    $region34: #{tpu_custom_call.1} parent=1 // pred_check
      _
    $region35: #{tpu_custom_call.1} parent=1 // pred_check_branch
      %65 = sbr.rel (0) target = $region37
    $region36: #{tpu_custom_call.1} parent=1 // pred_region
      _
    $region37: #{tpu_custom_call.1} parent=1 // pred_fallthru
      _
    // Predicated region
    $region38: #{tpu_custom_call.1} parent=1 // pred_check
      _
    $region39: #{tpu_custom_call.1} parent=1 // pred_check_branch
      %67 = sbr.rel (0) target = $region41
    $region40: #{tpu_custom_call.1} parent=1 // pred_region
      _
    $region41: #{tpu_custom_call.1} parent=1 // pred_fallthru
      _
    // Predicated region
    $region42: #{tpu_custom_call.1} parent=1 // pred_check
      _
    $region43: #{tpu_custom_call.1} parent=1 // pred_check_branch
      %69 = sbr.rel (0) target = $region45
    $region44: #{tpu_custom_call.1} parent=1 // pred_region
      _
    $region45: #{tpu_custom_call.1} parent=1 // pred_fallthru
      _
    // Predicated region
    $region46: #{tpu_custom_call.1} parent=1 // pred_check
      _
    $region47: #{tpu_custom_call.1} parent=1 // pred_check_branch
      %71 = sbr.rel (0) target = $region49
    $region48: #{tpu_custom_call.1} parent=1 // pred_region
      _
    $region49: #{tpu_custom_call.1} parent=1 // pred_fallthru
      _
    // Predicated region
    $region50: #{tpu_custom_call.1} parent=1 // pred_check
      _
    $region51: #{tpu_custom_call.1} parent=1 // pred_check_branch
      %73 = sbr.rel (0) target = $region53
    $region52: #{tpu_custom_call.1} parent=1 // pred_region
      _
    $region53: #{tpu_custom_call.1} parent=1 // pred_fallthru
      _
    // Predicated region
    $region54: #{tpu_custom_call.1} parent=1 // pred_check
      _
    $region55: #{tpu_custom_call.1} parent=1 // pred_check_branch
      %75 = sbr.rel (0) target = $region57
    $region56: #{tpu_custom_call.1} parent=1 // pred_region
      _
    $region57: #{tpu_custom_call.1} parent=1 // pred_fallthru
      _
    // Predicated region
    $region58: #{tpu_custom_call.1} parent=1 // pred_check
      _
    $region59: #{tpu_custom_call.1} parent=1 // pred_check_branch
      %77 = sbr.rel (0) target = $region61
    $region60: #{tpu_custom_call.1} parent=1 // pred_region
      _
    $region61: #{tpu_custom_call.1} parent=1 // pred_fallthru
      _
    // Predicated region
    $region62: #{tpu_custom_call.1} parent=1 // pred_check
      _
    $region63: #{tpu_custom_call.1} parent=1 // pred_check_branch
      %79 = sbr.rel (0) target = $region65
    $region64: #{tpu_custom_call.1} parent=1 // pred_region
      _
    $region65: #{tpu_custom_call.1} parent=1 // pred_fallthru
      _
    // Predicated region
    $region66: #{tpu_custom_call.1} parent=1 // pred_check
      _
    $region67: #{tpu_custom_call.1} parent=1 // pred_check_branch
      %81 = sbr.rel (0) target = $region69
    $region68: #{tpu_custom_call.1} parent=1 // pred_region
      _
    $region69: #{tpu_custom_call.1} parent=1 // pred_fallthru
      _
    // Predicated region
    $region70: #{tpu_custom_call.1} parent=1 // pred_check
      _
    $region71: #{tpu_custom_call.1} parent=1 // pred_check_branch
      %83 = sbr.rel (0) target = $region73
    $region72: #{tpu_custom_call.1} parent=1 // pred_region
      _
    $region73: #{tpu_custom_call.1} parent=1 // pred_fallthru
      _
    // Predicated region
    $region74: #{tpu_custom_call.1} parent=1 // pred_check
      _
    $region75: #{tpu_custom_call.1} parent=1 // pred_check_branch
      %85 = sbr.rel (0) target = $region77
    $region76: #{tpu_custom_call.1} parent=1 // pred_region
      _
    $region77: #{tpu_custom_call.1} parent=1 // pred_fallthru
      _
    // Predicated region
    $region78: #{tpu_custom_call.1} parent=1 // pred_check
      _
    $region79: #{tpu_custom_call.1} parent=1 // pred_check_branch
      %87 = sbr.rel (0) target = $region81
    $region80: #{tpu_custom_call.1} parent=1 // pred_region
      _
    $region81: #{tpu_custom_call.1} parent=1 // pred_fallthru
      _
    // Predicated region
    $region82: #{tpu_custom_call.1} parent=1 // pred_check
      _
    $region83: #{tpu_custom_call.1} parent=1 // pred_check_branch
      %89 = sbr.rel (0) target = $region85
    $region84: #{tpu_custom_call.1} parent=1 // pred_region
      _
    $region85: #{tpu_custom_call.1} parent=1 // pred_fallthru
      _
    // Predicated region
    $region86: #{tpu_custom_call.1} parent=1 // pred_check
      _
    $region87: #{tpu_custom_call.1} parent=1 // pred_check_branch
      %91 = sbr.rel (0) target = $region89
    $region88: #{tpu_custom_call.1} parent=1 // pred_region
      _
    $region89: #{tpu_custom_call.1} parent=1 // pred_fallthru
      _
    // Predicated region
    $region90: #{tpu_custom_call.1} parent=1 // pred_check
      _
    $region91: #{tpu_custom_call.1} parent=1 // pred_check_branch
      %93 = sbr.rel (0) target = $region93
    $region92: #{tpu_custom_call.1} parent=1 // pred_region
      _
    $region93: #{tpu_custom_call.1} parent=1 // pred_fallthru
      _
    // Predicated region
    $region94: #{tpu_custom_call.1} parent=1 // pred_check
      _
    $region95: #{tpu_custom_call.1} parent=1 // pred_check_branch
      %95 = sbr.rel (0) target = $region97
    $region96: #{tpu_custom_call.1} parent=1 // pred_region
      _
    $region97: #{tpu_custom_call.1} parent=1 // pred_fallthru
      _
    // Predicated region
    $region98: #{tpu_custom_call.1} parent=1 // pred_check
      _
    $region99: #{tpu_custom_call.1} parent=1 // pred_check_branch
      %97 = sbr.rel (0) target = $region101
    $region100: #{tpu_custom_call.1} parent=1 // pred_region
      %98 = dma.done [#allocation3], 16
    $region101: #{tpu_custom_call.1} parent=1 // pred_fallthru
      _
    // Predicated region
    $region102: #{tpu_custom_call.1} parent=1 // pred_check
      _
    $region103: #{tpu_custom_call.1} parent=1 // pred_check_branch
      %100 = sbr.rel (0) target = $region105
    $region104: #{tpu_custom_call.1} parent=1 // pred_region
      %101 = dma.done [#allocation6], 16
    $region105: #{tpu_custom_call.1} parent=1 // pred_fallthru
      _
    %v103 = vld [vmem:[%s0] sm:$0xf]
    %v104 = vld [vmem:[%s0 + $0x4] sm:$0xf]
    %v105 = vld [vmem:[%s0 + $0x8] sm:$0xf]
    %v106 = vld [vmem:[%s0 + $0xc] sm:$0xf]
    %v107 = vld [vmem:[%s0 + $0x10] sm:$0xf]
    %v108 = vld [vmem:[%s0 + $0x14] sm:$0xf]
    %v109 = vld [vmem:[%s0 + $0x18] sm:$0xf]
    %v110 = vld [vmem:[%s0 + $0x1c] sm:$0xf]
    %v111 = vld [vmem:[%s0 + $0x20] sm:$0xf]
    %v112 = vld [vmem:[%s0 + $0x24] sm:$0xf]
    %v113 = vld [vmem:[%s0 + $0x28] sm:$0xf]
    %v114 = vld [vmem:[%s0 + $0x2c] sm:$0xf]
    %v115 = vld [vmem:[%s0 + $0x30] sm:$0xf]
    %v116 = vld [vmem:[%s0 + $0x34] sm:$0xf]
    %v117 = vld [vmem:[%s0 + $0x38] sm:$0xf]
    %v118 = vld [vmem:[%s0 + $0x3c] sm:$0xf]
    %v119 = vld [vmem:[%s1] sm:$0xff]
    %v120 = vld [vmem:[%s1 + $0x8] sm:$0xff]
    %v121 = vld [vmem:[%s1 + $0x10] sm:$0xff]
    %v122 = vld [vmem:[%s1 + $0x18] sm:$0xff]
    %v123 = vld [vmem:[%s1 + $0x20] sm:$0xff]
    %v124 = vld [vmem:[%s1 + $0x28] sm:$0xff]
    %v125 = vld [vmem:[%s1 + $0x30] sm:$0xff]
    %v126 = vld [vmem:[%s1 + $0x38] sm:$0xff]
    %v127 = vld [vmem:[%s1 + $0x40] sm:$0xff]
    %v128 = vld [vmem:[%s1 + $0x48] sm:$0xff]
    %v129 = vld [vmem:[%s1 + $0x50] sm:$0xff]
    %v130 = vld [vmem:[%s1 + $0x58] sm:$0xff]
    %v131 = vld [vmem:[%s1 + $0x60] sm:$0xff]
    %v132 = vld [vmem:[%s1 + $0x68] sm:$0xff]
    %v133 = vld [vmem:[%s1 + $0x70] sm:$0xff]
    %v134 = vld [vmem:[%s1 + $0x78] sm:$0xff]
    %v135 = vpack.c.bf16 %v120, %v119
    %v136 = vpack.c.bf16 %v122, %v121
    %v137 = vpack.c.bf16 %v124, %v123
    %v138 = vpack.c.bf16 %v126, %v125
    %v139 = vpack.c.bf16 %v128, %v127
    %v140 = vpack.c.bf16 %v130, %v129
    %v141 = vpack.c.bf16 %v132, %v131
    %v142 = vpack.c.bf16 %v134, %v133
    %v143 = vld [vmem:[%s2] sm:$0xf]
    %v144 = vld [vmem:[%s2 + $0x4] sm:$0xf]
    %v145 = vld [vmem:[%s2 + $0x8] sm:$0xf]
    %v146 = vld [vmem:[%s2 + $0xc] sm:$0xf]
    %v147 = vld [vmem:[%s2 + $0x10] sm:$0xf]
    %v148 = vld [vmem:[%s2 + $0x14] sm:$0xf]
    %v149 = vld [vmem:[%s2 + $0x18] sm:$0xf]
    %v150 = vld [vmem:[%s2 + $0x1c] sm:$0xf]
    %v159 = vunpack.c.l.b16 %v143
    %v160 = vunpack.c.l.b16 %v144
    %v161 = vunpack.c.l.b16 %v145
    %v162 = vunpack.c.l.b16 %v146
    %v163 = vunpack.c.l.b16 %v147
    %v164 = vunpack.c.l.b16 %v148
    %v165 = vunpack.c.l.b16 %v149
    %v166 = vunpack.c.l.b16 %v150
    %v167 = vpack.c.b16 %v160, %v159
    %v168 = vpack.c.b16 %v162, %v161
    %v169 = vpack.c.b16 %v164, %v163
    %v170 = vpack.c.b16 %v166, %v165
    %vm175 = vcmask 523264
    %v177 = vsel %vm175, %v135, 0
    %v180 = vsel %vm175, %v136, 0
    %v183 = vsel %vm175, %v137, 0
    %v186 = vsel %vm175, %v138, 0
    %v189 = vsel %vm175, %v139, 0
    %v192 = vsel %vm175, %v140, 0
    %v195 = vsel %vm175, %v141, 0
    %v198 = vsel %vm175, %v142, 0
    %200 = vmatprep.subr.bf16.mxu0 0
    %201 = vmatpush1.bf16.msra.mxu0 %v167
    %202 = vmatprep.subr.bf16.mxu0 0
    %203 = vmatpush1.bf16.msra.mxu0 %v168
    %204 = vmatprep.subr.bf16.mxu0 0
    %205 = vmatpush1.bf16.msra.mxu0 %v169
    %206 = vmatprep.subr.bf16.mxu0 0
    %207 = vmatpush1.bf16.msra.mxu0 %v170
    %208 = vmatprep.subr.bf16.mxu0 0
    %209 = vmatpush1.bf16.msra.mxu0 0
    %210 = vmatprep.subr.bf16.mxu0 0
    %211 = vmatpush1.bf16.msra.mxu0 0
    %212 = vmatprep.subr.bf16.mxu0 0
    %213 = vmatpush1.bf16.msra.mxu0 0
    %214 = vmatprep.subr.bf16.mxu0 0
    %215 = vmatpush1.bf16.msra.mxu0 0
    %216 = vmatprep.subr.bf16.mxu0 0
    %217 = vmatpush1.bf16.msra.mxu0 0
    %218 = vmatprep.subr.bf16.mxu0 0
    %219 = vmatpush1.bf16.msra.mxu0 0
    %220 = vmatprep.subr.bf16.mxu0 0
    %221 = vmatpush1.bf16.msra.mxu0 0
    %222 = vmatprep.subr.bf16.mxu0 0
    %223 = vmatpush1.bf16.msra.mxu0 0
    %224 = vmatprep.subr.bf16.mxu0 0
    %225 = vmatpush1.bf16.msra.mxu0 0
    %226 = vmatprep.subr.bf16.mxu0 0
    %227 = vmatpush1.bf16.msra.mxu0 0
    %228 = vmatprep.subr.bf16.mxu0 0
    %229 = vmatpush1.bf16.msra.mxu0 0
    %230 = vmatprep.subr.bf16.mxu0 0
    %231 = vmatpush1.bf16.msra.mxu0 0
    %232 = vmatprep.mubr.bf16.mxu0 0
    %233 = vmatmul.mubr.bf16.gmra.mrb[0].mxu0 %v177
    %v234 = vpop.f32.mrb[0].mxu0
    %v235 = vadd.f32 0.0, %v234
    %v236 = vpop.f32.mrb[0].mxu0
    %v237 = vpop.f32.mrb[0].mxu0
    %v238 = vadd.f32 0.0, %v237
    %v239 = vpop.f32.mrb[0].mxu0
    %240 = vmatprep.mubr.bf16.mxu0 0
    %241 = vmatmul.mubr.bf16.gmra.mrb[0].mxu0 %v180
    %v242 = vpop.f32.mrb[0].mxu0
    %v243 = vadd.f32 0.0, %v242
    %v244 = vpop.f32.mrb[0].mxu0
    %v245 = vpop.f32.mrb[0].mxu0
    %v246 = vadd.f32 0.0, %v245
    %v247 = vpop.f32.mrb[0].mxu0
    %248 = vmatprep.mubr.bf16.mxu0 0
    %249 = vmatmul.mubr.bf16.gmra.mrb[0].mxu0 %v183
    %v250 = vpop.f32.mrb[0].mxu0
    %v251 = vadd.f32 0.0, %v250
    %v252 = vpop.f32.mrb[0].mxu0
    %v253 = vpop.f32.mrb[0].mxu0
    %v254 = vadd.f32 0.0, %v253
    %v255 = vpop.f32.mrb[0].mxu0
    %256 = vmatprep.mubr.bf16.mxu0 0
    %257 = vmatmul.mubr.bf16.gmra.mrb[0].mxu0 %v186
    %v258 = vpop.f32.mrb[0].mxu0
    %v259 = vadd.f32 0.0, %v258
    %v260 = vpop.f32.mrb[0].mxu0
    %v261 = vpop.f32.mrb[0].mxu0
    %v262 = vadd.f32 0.0, %v261
    %v263 = vpop.f32.mrb[0].mxu0
    %264 = vmatprep.mubr.bf16.mxu0 0
    %265 = vmatmul.mubr.bf16.gmra.mrb[0].mxu0 %v189
    %v266 = vpop.f32.mrb[0].mxu0
    %v267 = vadd.f32 0.0, %v266
    %v268 = vpop.f32.mrb[0].mxu0
    %v269 = vpop.f32.mrb[0].mxu0
    %v270 = vadd.f32 0.0, %v269
    %v271 = vpop.f32.mrb[0].mxu0
    %272 = vmatprep.mubr.bf16.mxu0 0
    %273 = vmatmul.mubr.bf16.gmra.mrb[0].mxu0 %v192
    %v274 = vpop.f32.mrb[0].mxu0
    %v275 = vadd.f32 0.0, %v274
    %v276 = vpop.f32.mrb[0].mxu0
    %v277 = vpop.f32.mrb[0].mxu0
    %v278 = vadd.f32 0.0, %v277
    %v279 = vpop.f32.mrb[0].mxu0
    %280 = vmatprep.mubr.bf16.mxu0 0
    %281 = vmatmul.mubr.bf16.gmra.mrb[0].mxu0 %v195
    %v282 = vpop.f32.mrb[0].mxu0
    %v283 = vadd.f32 0.0, %v282
    %v284 = vpop.f32.mrb[0].mxu0
    %v285 = vpop.f32.mrb[0].mxu0
    %v286 = vadd.f32 0.0, %v285
    %v287 = vpop.f32.mrb[0].mxu0
    %288 = vmatprep.mubr.bf16.mxu0 0
    %289 = vmatmul.mubr.bf16.gmra.mrb[0].mxu0 %v198
    %v290 = vpop.f32.mrb[0].mxu0
    %v291 = vadd.f32 0.0, %v290
    %v292 = vpop.f32.mrb[0].mxu0
    %v293 = vpop.f32.mrb[0].mxu0
    %v294 = vadd.f32 0.0, %v293
    %v295 = vpop.f32.mrb[0].mxu0
    %296 = vdwg.mxu0
    %v297 = vpack.c.bf16 %v238, %v235
    %v298 = vpack.c.bf16 %v246, %v243
    %v299 = vpack.c.bf16 %v254, %v251
    %v300 = vpack.c.bf16 %v262, %v259
    %v301 = vpack.c.bf16 %v270, %v267
    %v302 = vpack.c.bf16 %v278, %v275
    %v303 = vpack.c.bf16 %v286, %v283
    %v304 = vpack.c.bf16 %v294, %v291
    %v321 = vunpack.c.l.b16 %v103
    %v322 = vunpack.c.l.b16 %v104
    %v323 = vunpack.c.l.b16 %v105
    %v324 = vunpack.c.l.b16 %v106
    %v325 = vunpack.c.l.b16 %v107
    %v326 = vunpack.c.l.b16 %v108
    %v327 = vunpack.c.l.b16 %v109
    %v328 = vunpack.c.l.b16 %v110
    %v329 = vunpack.c.l.b16 %v111
    %v330 = vunpack.c.l.b16 %v112
    %v331 = vunpack.c.l.b16 %v113
    %v332 = vunpack.c.l.b16 %v114
    %v333 = vunpack.c.l.b16 %v115
    %v334 = vunpack.c.l.b16 %v116
    %v335 = vunpack.c.l.b16 %v117
    %v336 = vunpack.c.l.b16 %v118
    %v337 = vpack.c.b16 %v322, %v321
    %v338 = vpack.c.b16 %v324, %v323
    %v339 = vpack.c.b16 %v326, %v325
    %v340 = vpack.c.b16 %v328, %v327
    %v341 = vpack.c.b16 %v330, %v329
    %v342 = vpack.c.b16 %v332, %v331
    %v343 = vpack.c.b16 %v334, %v333
    %v344 = vpack.c.b16 %v336, %v335
    %353 = vmatprep.subr.bf16.mxu0 0
    %354 = vmatpush1.bf16.msra.mxu0 %v297
    %355 = vmatprep.subr.bf16.mxu0 0
    %356 = vmatpush1.bf16.msra.mxu0 %v298
    %357 = vmatprep.subr.bf16.mxu0 0
    %358 = vmatpush1.bf16.msra.mxu0 %v299
    %359 = vmatprep.subr.bf16.mxu0 0
    %360 = vmatpush1.bf16.msra.mxu0 %v300
    %361 = vmatprep.subr.bf16.mxu0 0
    %362 = vmatpush1.bf16.msra.mxu0 %v301
    %363 = vmatprep.subr.bf16.mxu0 0
    %364 = vmatpush1.bf16.msra.mxu0 %v302
    %365 = vmatprep.subr.bf16.mxu0 0
    %366 = vmatpush1.bf16.msra.mxu0 %v303
    %367 = vmatprep.subr.bf16.mxu0 0
    %368 = vmatpush1.bf16.msra.mxu0 %v304
    %369 = vmatprep.subr.bf16.mxu0 0
    %370 = vmatpush1.bf16.msra.mxu0 0
    %371 = vmatprep.subr.bf16.mxu0 0
    %372 = vmatpush1.bf16.msra.mxu0 0
    %373 = vmatprep.subr.bf16.mxu0 0
    %374 = vmatpush1.bf16.msra.mxu0 0
    %375 = vmatprep.subr.bf16.mxu0 0
    %376 = vmatpush1.bf16.msra.mxu0 0
    %377 = vmatprep.subr.bf16.mxu0 0
    %378 = vmatpush1.bf16.msra.mxu0 0
    %379 = vmatprep.subr.bf16.mxu0 0
    %380 = vmatpush1.bf16.msra.mxu0 0
    %381 = vmatprep.subr.bf16.mxu0 0
    %382 = vmatpush1.bf16.msra.mxu0 0
    %383 = vmatprep.subr.bf16.mxu0 0
    %384 = vmatpush1.bf16.msra.mxu0 0
    %385 = vmatprep.mubr.bf16.mxu0 0
    %386 = vmatmul.mubr.bf16.gmra.mrb[0].mxu0 %v337
    %v387 = vpop.f32.mrb[0].mxu0
    %v388 = vadd.f32 0.0, %v387
    %v389 = vpop.f32.mrb[0].mxu0
    %v390 = vpop.f32.mrb[0].mxu0
    %v391 = vadd.f32 0.0, %v390
    %v392 = vpop.f32.mrb[0].mxu0
    %393 = vmatprep.mubr.bf16.mxu0 0
    %394 = vmatmul.mubr.bf16.gmra.mrb[0].mxu0 %v338
    %v395 = vpop.f32.mrb[0].mxu0
    %v396 = vadd.f32 0.0, %v395
    %v397 = vpop.f32.mrb[0].mxu0
    %v398 = vpop.f32.mrb[0].mxu0
    %v399 = vadd.f32 0.0, %v398
    %v400 = vpop.f32.mrb[0].mxu0
    %401 = vmatprep.mubr.bf16.mxu0 0
    %402 = vmatmul.mubr.bf16.gmra.mrb[0].mxu0 %v339
    %v403 = vpop.f32.mrb[0].mxu0
    %v404 = vadd.f32 0.0, %v403
    %v405 = vpop.f32.mrb[0].mxu0
    %v406 = vpop.f32.mrb[0].mxu0
    %v407 = vadd.f32 0.0, %v406
    %v408 = vpop.f32.mrb[0].mxu0
    %409 = vmatprep.mubr.bf16.mxu0 0
    %410 = vmatmul.mubr.bf16.gmra.mrb[0].mxu0 %v340
    %v411 = vpop.f32.mrb[0].mxu0
    %v412 = vadd.f32 0.0, %v411
    %v413 = vpop.f32.mrb[0].mxu0
    %v414 = vpop.f32.mrb[0].mxu0
    %v415 = vadd.f32 0.0, %v414
    %v416 = vpop.f32.mrb[0].mxu0
    %417 = vmatprep.mubr.bf16.mxu0 0
    %418 = vmatmul.mubr.bf16.gmra.mrb[0].mxu0 %v341
    %v419 = vpop.f32.mrb[0].mxu0
    %v420 = vadd.f32 0.0, %v419
    %v421 = vpop.f32.mrb[0].mxu0
    %v422 = vpop.f32.mrb[0].mxu0
    %v423 = vadd.f32 0.0, %v422
    %v424 = vpop.f32.mrb[0].mxu0
    %425 = vmatprep.mubr.bf16.mxu0 0
    %426 = vmatmul.mubr.bf16.gmra.mrb[0].mxu0 %v342
    %v427 = vpop.f32.mrb[0].mxu0
    %v428 = vadd.f32 0.0, %v427
    %v429 = vpop.f32.mrb[0].mxu0
    %v430 = vpop.f32.mrb[0].mxu0
    %v431 = vadd.f32 0.0, %v430
    %v432 = vpop.f32.mrb[0].mxu0
    %433 = vmatprep.mubr.bf16.mxu0 0
    %434 = vmatmul.mubr.bf16.gmra.mrb[0].mxu0 %v343
    %v435 = vpop.f32.mrb[0].mxu0
    %v436 = vadd.f32 0.0, %v435
    %v437 = vpop.f32.mrb[0].mxu0
    %v438 = vpop.f32.mrb[0].mxu0
    %v439 = vadd.f32 0.0, %v438
    %v440 = vpop.f32.mrb[0].mxu0
    %441 = vmatprep.mubr.bf16.mxu0 0
    %442 = vmatmul.mubr.bf16.gmra.mrb[0].mxu0 %v344
    %v443 = vpop.f32.mrb[0].mxu0
    %v444 = vadd.f32 0.0, %v443
    %v445 = vpop.f32.mrb[0].mxu0
    %v446 = vpop.f32.mrb[0].mxu0
    %v447 = vadd.f32 0.0, %v446
    %v448 = vpop.f32.mrb[0].mxu0
    %449 = vdwg.mxu0
    %v450 = vsel %vm175, %v388, 0.0
    %v451 = vsel %vm175, %v391, 0.0
    %v452 = vadd.f32 %v450, %v451
    %v453 = vsel %vm175, %v396, 0.0
    %v454 = vadd.f32 %v452, %v453
    %v455 = vsel %vm175, %v399, 0.0
    %v456 = vadd.f32 %v454, %v455
    %v457 = vsel %vm175, %v404, 0.0
    %v458 = vadd.f32 %v456, %v457
    %v459 = vsel %vm175, %v407, 0.0
    %v460 = vadd.f32 %v458, %v459
    %v461 = vsel %vm175, %v412, 0.0
    %v462 = vadd.f32 %v460, %v461
    %v463 = vsel %vm175, %v415, 0.0
    %v464 = vadd.f32 %v462, %v463
    %v465 = vsel %vm175, %v420, 0.0
    %v466 = vadd.f32 %v464, %v465
    %v467 = vsel %vm175, %v423, 0.0
    %v468 = vadd.f32 %v466, %v467
    %v469 = vsel %vm175, %v428, 0.0
    %v470 = vadd.f32 %v468, %v469
    %v471 = vsel %vm175, %v431, 0.0
    %v472 = vadd.f32 %v470, %v471
    %v473 = vsel %vm175, %v436, 0.0
    %v474 = vadd.f32 %v472, %v473
    %v475 = vsel %vm175, %v439, 0.0
    %v476 = vadd.f32 %v474, %v475
    %v477 = vsel %vm175, %v444, 0.0
    %v478 = vadd.f32 %v476, %v477
    %v479 = vsel %vm175, %v447, 0.0
    %v480 = vadd.f32 %v478, %v479
    %v481 = vrot.slane %v480, 4
    %v482 = vadd.f32 %v480, %v481
    %v483 = vrot.slane %v482, 2
    %v484 = vadd.f32 %v482, %v483
    %v485 = vrot.slane %v484, 1
    %v486 = vadd.f32 %v484, %v485
    %v487 = vmul.f32 %v486, 0.0078125
    %v488 = vmul.f32 %v388, %v388
    %v489 = vmul.f32 %v391, %v391
    %v490 = vmul.f32 %v396, %v396
    %v491 = vmul.f32 %v399, %v399
    %v492 = vmul.f32 %v404, %v404
    %v493 = vmul.f32 %v407, %v407
    %v494 = vmul.f32 %v412, %v412
    %v495 = vmul.f32 %v415, %v415
    %v496 = vmul.f32 %v420, %v420
    %v497 = vmul.f32 %v423, %v423
    %v498 = vmul.f32 %v428, %v428
    %v499 = vmul.f32 %v431, %v431
    %v500 = vmul.f32 %v436, %v436
    %v501 = vmul.f32 %v439, %v439
    %v502 = vmul.f32 %v444, %v444
    %v503 = vmul.f32 %v447, %v447
    %v504 = vsel %vm175, %v488, 0.0
    %v505 = vsel %vm175, %v489, 0.0
    %v506 = vadd.f32 %v504, %v505
    %v507 = vsel %vm175, %v490, 0.0
    %v508 = vadd.f32 %v506, %v507
    %v509 = vsel %vm175, %v491, 0.0
    %v510 = vadd.f32 %v508, %v509
    %v511 = vsel %vm175, %v492, 0.0
    %v512 = vadd.f32 %v510, %v511
    %v513 = vsel %vm175, %v493, 0.0
    %v514 = vadd.f32 %v512, %v513
    %v515 = vsel %vm175, %v494, 0.0
    %v516 = vadd.f32 %v514, %v515
    %v517 = vsel %vm175, %v495, 0.0
    %v518 = vadd.f32 %v516, %v517
    %v519 = vsel %vm175, %v496, 0.0
    %v520 = vadd.f32 %v518, %v519
    %v521 = vsel %vm175, %v497, 0.0
    %v522 = vadd.f32 %v520, %v521
    %v523 = vsel %vm175, %v498, 0.0
    %v524 = vadd.f32 %v522, %v523
    %v525 = vsel %vm175, %v499, 0.0
    %v526 = vadd.f32 %v524, %v525
    %v527 = vsel %vm175, %v500, 0.0
    %v528 = vadd.f32 %v526, %v527
    %v529 = vsel %vm175, %v501, 0.0
    %v530 = vadd.f32 %v528, %v529
    %v531 = vsel %vm175, %v502, 0.0
    %v532 = vadd.f32 %v530, %v531
    %v533 = vsel %vm175, %v503, 0.0
    %v534 = vadd.f32 %v532, %v533
    %v535 = vrot.slane %v534, 4
    %v536 = vadd.f32 %v534, %v535
    %v537 = vrot.slane %v536, 2
    %v538 = vadd.f32 %v536, %v537
    %v539 = vrot.slane %v538, 1
    %v540 = vadd.f32 %v538, %v539
    %v541 = vmul.f32 %v540, 0.0078125
    %v542 = vmul.f32 %v487, %v487
    %v543 = vsub.f32 %v541, %v542
    %v544 = vld [vmem:[%s4] sm:$0x1]
    %v545 = vadd.f32 %v543, 1e-05
    %v546 = vrsqrt.pop %v545
    %v547 = vmul.f32 %v544, %v546
    %v549 = vlaneseq
    %v550 = vshrl.u32 %v549, 7
    %v551 = vsub.s32 0, %v550
    %v552 = vrot.slane %v547, %v551
    %v554 = vmul.f32 %v388, %v552
    %v555 = vmul.f32 %v391, %v552
    %v556 = vmul.f32 %v396, %v552
    %v557 = vmul.f32 %v399, %v552
    %v558 = vmul.f32 %v404, %v552
    %v559 = vmul.f32 %v407, %v552
    %v560 = vmul.f32 %v412, %v552
    %v561 = vmul.f32 %v415, %v552
    %v562 = vmul.f32 %v420, %v552
    %v563 = vmul.f32 %v423, %v552
    %v564 = vmul.f32 %v428, %v552
    %v565 = vmul.f32 %v431, %v552
    %v566 = vmul.f32 %v436, %v552
    %v567 = vmul.f32 %v439, %v552
    %v568 = vmul.f32 %v444, %v552
    %v569 = vmul.f32 %v447, %v552
    %v570 = vld [vmem:[#allocation2] sm:$0x1]
    %v571 = vmul.f32 %v487, %v547
    %v572 = vsub.f32 %v570, %v571
    %v574 = vlaneseq
    %v575 = vshrl.u32 %v574, 7
    %v576 = vsub.s32 0, %v575
    %v577 = vrot.slane %v572, %v576
    %v579 = vadd.f32 %v554, %v577
    %v580 = vadd.f32 %v555, %v577
    %v581 = vadd.f32 %v556, %v577
    %v582 = vadd.f32 %v557, %v577
    %v583 = vadd.f32 %v558, %v577
    %v584 = vadd.f32 %v559, %v577
    %v585 = vadd.f32 %v560, %v577
    %v586 = vadd.f32 %v561, %v577
    %v587 = vadd.f32 %v562, %v577
    %v588 = vadd.f32 %v563, %v577
    %v589 = vadd.f32 %v564, %v577
    %v590 = vadd.f32 %v565, %v577
    %v591 = vadd.f32 %v566, %v577
    %v592 = vadd.f32 %v567, %v577
    %v593 = vadd.f32 %v568, %v577
    %v594 = vadd.f32 %v569, %v577
    %v595 = vmax.f32 %v579, 0.0
    %v596 = vmax.f32 %v580, 0.0
    %v597 = vmax.f32 %v581, 0.0
    %v598 = vmax.f32 %v582, 0.0
    %v599 = vmax.f32 %v583, 0.0
    %v600 = vmax.f32 %v584, 0.0
    %v601 = vmax.f32 %v585, 0.0
    %v602 = vmax.f32 %v586, 0.0
    %v603 = vmax.f32 %v587, 0.0
    %v604 = vmax.f32 %v588, 0.0
    %v605 = vmax.f32 %v589, 0.0
    %v606 = vmax.f32 %v590, 0.0
    %v607 = vmax.f32 %v591, 0.0
    %v608 = vmax.f32 %v592, 0.0
    %v609 = vmax.f32 %v593, 0.0
    %v610 = vmax.f32 %v594, 0.0
    %v611 = vadd.f32 %v119, %v595
    %v612 = vadd.f32 %v120, %v596
    %v613 = vadd.f32 %v121, %v597
    %v614 = vadd.f32 %v122, %v598
    %v615 = vadd.f32 %v123, %v599
    %v616 = vadd.f32 %v124, %v600
    %v617 = vadd.f32 %v125, %v601
    %v618 = vadd.f32 %v126, %v602
    %v619 = vadd.f32 %v127, %v603
    %v620 = vadd.f32 %v128, %v604
    %v621 = vadd.f32 %v129, %v605
    %v622 = vadd.f32 %v130, %v606
    %v623 = vadd.f32 %v131, %v607
    %v624 = vadd.f32 %v132, %v608
    %v625 = vadd.f32 %v133, %v609
    %v626 = vadd.f32 %v134, %v610
    %v627 = vpack.c.bf16 %v612, %v611
    %v628 = vpack.c.bf16 %v614, %v613
    %v629 = vpack.c.bf16 %v616, %v615
    %v630 = vpack.c.bf16 %v618, %v617
    %v631 = vpack.c.bf16 %v620, %v619
    %v632 = vpack.c.bf16 %v622, %v621
    %v633 = vpack.c.bf16 %v624, %v623
    %v634 = vpack.c.bf16 %v626, %v625
    %v635 = vld [vmem:[%s6] sm:$0xf]
    %v636 = vld [vmem:[%s6 + $0x4] sm:$0xf]
    %v637 = vld [vmem:[%s6 + $0x8] sm:$0xf]
    %v638 = vld [vmem:[%s6 + $0xc] sm:$0xf]
    %v639 = vld [vmem:[%s6 + $0x10] sm:$0xf]
    %v640 = vld [vmem:[%s6 + $0x14] sm:$0xf]
    %v641 = vld [vmem:[%s6 + $0x18] sm:$0xf]
    %v642 = vld [vmem:[%s6 + $0x1c] sm:$0xf]
    %v651 = vunpack.c.l.b16 %v635
    %v652 = vunpack.c.l.b16 %v636
    %v653 = vunpack.c.l.b16 %v637
    %v654 = vunpack.c.l.b16 %v638
    %v655 = vunpack.c.l.b16 %v639
    %v656 = vunpack.c.l.b16 %v640
    %v657 = vunpack.c.l.b16 %v641
    %v658 = vunpack.c.l.b16 %v642
    %v659 = vpack.c.b16 %v652, %v651
    %v660 = vpack.c.b16 %v654, %v653
    %v661 = vpack.c.b16 %v656, %v655
    %v662 = vpack.c.b16 %v658, %v657
    %v668 = vsel %vm175, %v627, 0
    %v671 = vsel %vm175, %v628, 0
    %v674 = vsel %vm175, %v629, 0
    %v677 = vsel %vm175, %v630, 0
    %v680 = vsel %vm175, %v631, 0
    %v683 = vsel %vm175, %v632, 0
    %v686 = vsel %vm175, %v633, 0
    %v689 = vsel %vm175, %v634, 0
    %691 = vmatprep.subr.bf16.mxu0 0
    %692 = vmatpush1.bf16.msra.mxu0 %v659
    %693 = vmatprep.subr.bf16.mxu0 0
    %694 = vmatpush1.bf16.msra.mxu0 %v660
    %695 = vmatprep.subr.bf16.mxu0 0
    %696 = vmatpush1.bf16.msra.mxu0 %v661
    %697 = vmatprep.subr.bf16.mxu0 0
    %698 = vmatpush1.bf16.msra.mxu0 %v662
    %699 = vmatprep.subr.bf16.mxu0 0
    %700 = vmatpush1.bf16.msra.mxu0 0
    %701 = vmatprep.subr.bf16.mxu0 0
    %702 = vmatpush1.bf16.msra.mxu0 0
    %703 = vmatprep.subr.bf16.mxu0 0
    %704 = vmatpush1.bf16.msra.mxu0 0
    %705 = vmatprep.subr.bf16.mxu0 0
    %706 = vmatpush1.bf16.msra.mxu0 0
    %707 = vmatprep.subr.bf16.mxu0 0
    %708 = vmatpush1.bf16.msra.mxu0 0
    %709 = vmatprep.subr.bf16.mxu0 0
    %710 = vmatpush1.bf16.msra.mxu0 0
    %711 = vmatprep.subr.bf16.mxu0 0
    %712 = vmatpush1.bf16.msra.mxu0 0
    %713 = vmatprep.subr.bf16.mxu0 0
    %714 = vmatpush1.bf16.msra.mxu0 0
    %715 = vmatprep.subr.bf16.mxu0 0
    %716 = vmatpush1.bf16.msra.mxu0 0
    %717 = vmatprep.subr.bf16.mxu0 0
    %718 = vmatpush1.bf16.msra.mxu0 0
    %719 = vmatprep.subr.bf16.mxu0 0
    %720 = vmatpush1.bf16.msra.mxu0 0
    %721 = vmatprep.subr.bf16.mxu0 0
    %722 = vmatpush1.bf16.msra.mxu0 0
    %723 = vmatprep.mubr.bf16.mxu0 0
    %724 = vmatmul.mubr.bf16.gmra.mrb[0].mxu0 %v668
    %v725 = vpop.f32.mrb[0].mxu0
    %v726 = vadd.f32 0.0, %v725
    %v727 = vpop.f32.mrb[0].mxu0
    %v728 = vpop.f32.mrb[0].mxu0
    %v729 = vadd.f32 0.0, %v728
    %v730 = vpop.f32.mrb[0].mxu0
    %731 = vmatprep.mubr.bf16.mxu0 0
    %732 = vmatmul.mubr.bf16.gmra.mrb[0].mxu0 %v671
    %v733 = vpop.f32.mrb[0].mxu0
    %v734 = vadd.f32 0.0, %v733
    %v735 = vpop.f32.mrb[0].mxu0
    %v736 = vpop.f32.mrb[0].mxu0
    %v737 = vadd.f32 0.0, %v736
    %v738 = vpop.f32.mrb[0].mxu0
    %739 = vmatprep.mubr.bf16.mxu0 0
    %740 = vmatmul.mubr.bf16.gmra.mrb[0].mxu0 %v674
    %v741 = vpop.f32.mrb[0].mxu0
    %v742 = vadd.f32 0.0, %v741
    %v743 = vpop.f32.mrb[0].mxu0
    %v744 = vpop.f32.mrb[0].mxu0
    %v745 = vadd.f32 0.0, %v744
    %v746 = vpop.f32.mrb[0].mxu0
    %747 = vmatprep.mubr.bf16.mxu0 0
    %748 = vmatmul.mubr.bf16.gmra.mrb[0].mxu0 %v677
    %v749 = vpop.f32.mrb[0].mxu0
    %v750 = vadd.f32 0.0, %v749
    %v751 = vpop.f32.mrb[0].mxu0
    %v752 = vpop.f32.mrb[0].mxu0
    %v753 = vadd.f32 0.0, %v752
    %v754 = vpop.f32.mrb[0].mxu0
    %755 = vmatprep.mubr.bf16.mxu0 0
    %756 = vmatmul.mubr.bf16.gmra.mrb[0].mxu0 %v680
    %v757 = vpop.f32.mrb[0].mxu0
    %v758 = vadd.f32 0.0, %v757
    %v759 = vpop.f32.mrb[0].mxu0
    %v760 = vpop.f32.mrb[0].mxu0
    %v761 = vadd.f32 0.0, %v760
    %v762 = vpop.f32.mrb[0].mxu0
    %763 = vmatprep.mubr.bf16.mxu0 0
    %764 = vmatmul.mubr.bf16.gmra.mrb[0].mxu0 %v683
    %v765 = vpop.f32.mrb[0].mxu0
    %v766 = vadd.f32 0.0, %v765
    %v767 = vpop.f32.mrb[0].mxu0
    %v768 = vpop.f32.mrb[0].mxu0
    %v769 = vadd.f32 0.0, %v768
    %v770 = vpop.f32.mrb[0].mxu0
    %771 = vmatprep.mubr.bf16.mxu0 0
    %772 = vmatmul.mubr.bf16.gmra.mrb[0].mxu0 %v686
    %v773 = vpop.f32.mrb[0].mxu0
    %v774 = vadd.f32 0.0, %v773
    %v775 = vpop.f32.mrb[0].mxu0
    %v776 = vpop.f32.mrb[0].mxu0
    %v777 = vadd.f32 0.0, %v776
    %v778 = vpop.f32.mrb[0].mxu0
    %779 = vmatprep.mubr.bf16.mxu0 0
    %780 = vmatmul.mubr.bf16.gmra.mrb[0].mxu0 %v689
    %v781 = vpop.f32.mrb[0].mxu0
    %v782 = vadd.f32 0.0, %v781
    %v783 = vpop.f32.mrb[0].mxu0
    %v784 = vpop.f32.mrb[0].mxu0
    %v785 = vadd.f32 0.0, %v784
    %v786 = vpop.f32.mrb[0].mxu0
    %787 = vdwg.mxu0
    %v788 = vpack.c.bf16 %v729, %v726
    %v789 = vpack.c.bf16 %v737, %v734
    %v790 = vpack.c.bf16 %v745, %v742
    %v791 = vpack.c.bf16 %v753, %v750
    %v792 = vpack.c.bf16 %v761, %v758
    %v793 = vpack.c.bf16 %v769, %v766
    %v794 = vpack.c.bf16 %v777, %v774
    %v795 = vpack.c.bf16 %v785, %v782
    %796 = vmatprep.subr.bf16.mxu0 0
    %797 = vmatpush1.bf16.msra.mxu0 %v788
    %798 = vmatprep.subr.bf16.mxu0 0
    %799 = vmatpush1.bf16.msra.mxu0 %v789
    %800 = vmatprep.subr.bf16.mxu0 0
    %801 = vmatpush1.bf16.msra.mxu0 %v790
    %802 = vmatprep.subr.bf16.mxu0 0
    %803 = vmatpush1.bf16.msra.mxu0 %v791
    %804 = vmatprep.subr.bf16.mxu0 0
    %805 = vmatpush1.bf16.msra.mxu0 %v792
    %806 = vmatprep.subr.bf16.mxu0 0
    %807 = vmatpush1.bf16.msra.mxu0 %v793
    %808 = vmatprep.subr.bf16.mxu0 0
    %809 = vmatpush1.bf16.msra.mxu0 %v794
    %810 = vmatprep.subr.bf16.mxu0 0
    %811 = vmatpush1.bf16.msra.mxu0 %v795
    %812 = vmatprep.subr.bf16.mxu0 0
    %813 = vmatpush1.bf16.msra.mxu0 0
    %814 = vmatprep.subr.bf16.mxu0 0
    %815 = vmatpush1.bf16.msra.mxu0 0
    %816 = vmatprep.subr.bf16.mxu0 0
    %817 = vmatpush1.bf16.msra.mxu0 0
    %818 = vmatprep.subr.bf16.mxu0 0
    %819 = vmatpush1.bf16.msra.mxu0 0
    %820 = vmatprep.subr.bf16.mxu0 0
    %821 = vmatpush1.bf16.msra.mxu0 0
    %822 = vmatprep.subr.bf16.mxu0 0
    %823 = vmatpush1.bf16.msra.mxu0 0
    %824 = vmatprep.subr.bf16.mxu0 0
    %825 = vmatpush1.bf16.msra.mxu0 0
    %826 = vmatprep.subr.bf16.mxu0 0
    %827 = vmatpush1.bf16.msra.mxu0 0
    %828 = vmatprep.mubr.bf16.mxu0 0
    %829 = vmatmul.mubr.bf16.gmra.mrb[0].mxu0 %v337
    %v830 = vpop.f32.mrb[0].mxu0
    %v831 = vadd.f32 0.0, %v830
    %v832 = vpop.f32.mrb[0].mxu0
    %v833 = vpop.f32.mrb[0].mxu0
    %v834 = vadd.f32 0.0, %v833
    %v835 = vpop.f32.mrb[0].mxu0
    %836 = vmatprep.mubr.bf16.mxu0 0
    %837 = vmatmul.mubr.bf16.gmra.mrb[0].mxu0 %v338
    %v838 = vpop.f32.mrb[0].mxu0
    %v839 = vadd.f32 0.0, %v838
    %v840 = vpop.f32.mrb[0].mxu0
    %v841 = vpop.f32.mrb[0].mxu0
    %v842 = vadd.f32 0.0, %v841
    %v843 = vpop.f32.mrb[0].mxu0
    %844 = vmatprep.mubr.bf16.mxu0 0
    %845 = vmatmul.mubr.bf16.gmra.mrb[0].mxu0 %v339
    %v846 = vpop.f32.mrb[0].mxu0
    %v847 = vadd.f32 0.0, %v846
    %v848 = vpop.f32.mrb[0].mxu0
    %v849 = vpop.f32.mrb[0].mxu0
    %v850 = vadd.f32 0.0, %v849
    %v851 = vpop.f32.mrb[0].mxu0
    %852 = vmatprep.mubr.bf16.mxu0 0
    %853 = vmatmul.mubr.bf16.gmra.mrb[0].mxu0 %v340
    %v854 = vpop.f32.mrb[0].mxu0
    %v855 = vadd.f32 0.0, %v854
    %v856 = vpop.f32.mrb[0].mxu0
    %v857 = vpop.f32.mrb[0].mxu0
    %v858 = vadd.f32 0.0, %v857
    %v859 = vpop.f32.mrb[0].mxu0
    %860 = vmatprep.mubr.bf16.mxu0 0
    %861 = vmatmul.mubr.bf16.gmra.mrb[0].mxu0 %v341
    %v862 = vpop.f32.mrb[0].mxu0
    %v863 = vadd.f32 0.0, %v862
    %v864 = vpop.f32.mrb[0].mxu0
    %v865 = vpop.f32.mrb[0].mxu0
    %v866 = vadd.f32 0.0, %v865
    %v867 = vpop.f32.mrb[0].mxu0
    %868 = vmatprep.mubr.bf16.mxu0 0
    %869 = vmatmul.mubr.bf16.gmra.mrb[0].mxu0 %v342
    %v870 = vpop.f32.mrb[0].mxu0
    %v871 = vadd.f32 0.0, %v870
    %v872 = vpop.f32.mrb[0].mxu0
    %v873 = vpop.f32.mrb[0].mxu0
    %v874 = vadd.f32 0.0, %v873
    %v875 = vpop.f32.mrb[0].mxu0
    %876 = vmatprep.mubr.bf16.mxu0 0
    %877 = vmatmul.mubr.bf16.gmra.mrb[0].mxu0 %v343
    %v878 = vpop.f32.mrb[0].mxu0
    %v879 = vadd.f32 0.0, %v878
    %v880 = vpop.f32.mrb[0].mxu0
    %v881 = vpop.f32.mrb[0].mxu0
    %v882 = vadd.f32 0.0, %v881
    %v883 = vpop.f32.mrb[0].mxu0
    %884 = vmatprep.mubr.bf16.mxu0 0
    %885 = vmatmul.mubr.bf16.gmra.mrb[0].mxu0 %v344
    %v886 = vpop.f32.mrb[0].mxu0
    %v887 = vadd.f32 0.0, %v886
    %v888 = vpop.f32.mrb[0].mxu0
    %v889 = vpop.f32.mrb[0].mxu0
    %v890 = vadd.f32 0.0, %v889
    %v891 = vpop.f32.mrb[0].mxu0
    %892 = vdwg.mxu0
    %v893 = vsel %vm175, %v831, 0.0
    %v894 = vsel %vm175, %v834, 0.0
    %v895 = vadd.f32 %v893, %v894
    %v896 = vsel %vm175, %v839, 0.0
    %v897 = vadd.f32 %v895, %v896
    %v898 = vsel %vm175, %v842, 0.0
    %v899 = vadd.f32 %v897, %v898
    %v900 = vsel %vm175, %v847, 0.0
    %v901 = vadd.f32 %v899, %v900
    %v902 = vsel %vm175, %v850, 0.0
    %v903 = vadd.f32 %v901, %v902
    %v904 = vsel %vm175, %v855, 0.0
    %v905 = vadd.f32 %v903, %v904
    %v906 = vsel %vm175, %v858, 0.0
    %v907 = vadd.f32 %v905, %v906
    %v908 = vsel %vm175, %v863, 0.0
    %v909 = vadd.f32 %v907, %v908
    %v910 = vsel %vm175, %v866, 0.0
    %v911 = vadd.f32 %v909, %v910
    %v912 = vsel %vm175, %v871, 0.0
    %v913 = vadd.f32 %v911, %v912
    %v914 = vsel %vm175, %v874, 0.0
    %v915 = vadd.f32 %v913, %v914
    %v916 = vsel %vm175, %v879, 0.0
    %v917 = vadd.f32 %v915, %v916
    %v918 = vsel %vm175, %v882, 0.0
    %v919 = vadd.f32 %v917, %v918
    %v920 = vsel %vm175, %v887, 0.0
    %v921 = vadd.f32 %v919, %v920
    %v922 = vsel %vm175, %v890, 0.0
    %v923 = vadd.f32 %v921, %v922
    %v924 = vrot.slane %v923, 4
    %v925 = vadd.f32 %v923, %v924
    %v926 = vrot.slane %v925, 2
    %v927 = vadd.f32 %v925, %v926
    %v928 = vrot.slane %v927, 1
    %v929 = vadd.f32 %v927, %v928
    %v930 = vmul.f32 %v929, 0.0078125
    %v931 = vmul.f32 %v831, %v831
    %v932 = vmul.f32 %v834, %v834
    %v933 = vmul.f32 %v839, %v839
    %v934 = vmul.f32 %v842, %v842
    %v935 = vmul.f32 %v847, %v847
    %v936 = vmul.f32 %v850, %v850
    %v937 = vmul.f32 %v855, %v855
    %v938 = vmul.f32 %v858, %v858
    %v939 = vmul.f32 %v863, %v863
    %v940 = vmul.f32 %v866, %v866
    %v941 = vmul.f32 %v871, %v871
    %v942 = vmul.f32 %v874, %v874
    %v943 = vmul.f32 %v879, %v879
    %v944 = vmul.f32 %v882, %v882
    %v945 = vmul.f32 %v887, %v887
    %v946 = vmul.f32 %v890, %v890
    %v947 = vsel %vm175, %v931, 0.0
    %v948 = vsel %vm175, %v932, 0.0
    %v949 = vadd.f32 %v947, %v948
    %v950 = vsel %vm175, %v933, 0.0
    %v951 = vadd.f32 %v949, %v950
    %v952 = vsel %vm175, %v934, 0.0
    %v953 = vadd.f32 %v951, %v952
    %v954 = vsel %vm175, %v935, 0.0
    %v955 = vadd.f32 %v953, %v954
    %v956 = vsel %vm175, %v936, 0.0
    %v957 = vadd.f32 %v955, %v956
    %v958 = vsel %vm175, %v937, 0.0
    %v959 = vadd.f32 %v957, %v958
    %v960 = vsel %vm175, %v938, 0.0
    %v961 = vadd.f32 %v959, %v960
    %v962 = vsel %vm175, %v939, 0.0
    %v963 = vadd.f32 %v961, %v962
    %v964 = vsel %vm175, %v940, 0.0
    %v965 = vadd.f32 %v963, %v964
    %v966 = vsel %vm175, %v941, 0.0
    %v967 = vadd.f32 %v965, %v966
    %v968 = vsel %vm175, %v942, 0.0
    %v969 = vadd.f32 %v967, %v968
    %v970 = vsel %vm175, %v943, 0.0
    %v971 = vadd.f32 %v969, %v970
    %v972 = vsel %vm175, %v944, 0.0
    %v973 = vadd.f32 %v971, %v972
    %v974 = vsel %vm175, %v945, 0.0
    %v975 = vadd.f32 %v973, %v974
    %v976 = vsel %vm175, %v946, 0.0
    %v977 = vadd.f32 %v975, %v976
    %v978 = vrot.slane %v977, 4
    %v979 = vadd.f32 %v977, %v978
    %v980 = vrot.slane %v979, 2
    %v981 = vadd.f32 %v979, %v980
    %v982 = vrot.slane %v981, 1
    %v983 = vadd.f32 %v981, %v982
    %v984 = vmul.f32 %v983, 0.0078125
    %v985 = vmul.f32 %v930, %v930
    %v986 = vsub.f32 %v984, %v985
    %v987 = vld [vmem:[%s8] sm:$0x1]
    %v988 = vadd.f32 %v986, 1e-05
    %v989 = vrsqrt.pop %v988
    %v990 = vmul.f32 %v987, %v989
    %v992 = vlaneseq
    %v993 = vshrl.u32 %v992, 7
    %v994 = vsub.s32 0, %v993
    %v995 = vrot.slane %v990, %v994
    %v997 = vmul.f32 %v831, %v995
    %v998 = vmul.f32 %v834, %v995
    %v999 = vmul.f32 %v839, %v995
    %v1000 = vmul.f32 %v842, %v995
    %v1001 = vmul.f32 %v847, %v995
    %v1002 = vmul.f32 %v850, %v995
    %v1003 = vmul.f32 %v855, %v995
    %v1004 = vmul.f32 %v858, %v995
    %v1005 = vmul.f32 %v863, %v995
    %v1006 = vmul.f32 %v866, %v995
    %v1007 = vmul.f32 %v871, %v995
    %v1008 = vmul.f32 %v874, %v995
    %v1009 = vmul.f32 %v879, %v995
    %v1010 = vmul.f32 %v882, %v995
    %v1011 = vmul.f32 %v887, %v995
    %v1012 = vmul.f32 %v890, %v995
    %v1013 = vld [vmem:[%s9] sm:$0x1]
    %v1014 = vmul.f32 %v930, %v990
    %v1015 = vsub.f32 %v1013, %v1014
    %v1017 = vlaneseq
    %v1018 = vshrl.u32 %v1017, 7
    %v1019 = vsub.s32 0, %v1018
    %v1020 = vrot.slane %v1015, %v1019
    %v1022 = vadd.f32 %v997, %v1020
    %v1023 = vadd.f32 %v998, %v1020
    %v1024 = vadd.f32 %v999, %v1020
    %v1025 = vadd.f32 %v1000, %v1020
    %v1026 = vadd.f32 %v1001, %v1020
    %v1027 = vadd.f32 %v1002, %v1020
    %v1028 = vadd.f32 %v1003, %v1020
    %v1029 = vadd.f32 %v1004, %v1020
    %v1030 = vadd.f32 %v1005, %v1020
    %v1031 = vadd.f32 %v1006, %v1020
    %v1032 = vadd.f32 %v1007, %v1020
    %v1033 = vadd.f32 %v1008, %v1020
    %v1034 = vadd.f32 %v1009, %v1020
    %v1035 = vadd.f32 %v1010, %v1020
    %v1036 = vadd.f32 %v1011, %v1020
    %v1037 = vadd.f32 %v1012, %v1020
    %v1038 = vmax.f32 %v1022, 0.0
    %v1039 = vmax.f32 %v1023, 0.0
    %v1040 = vmax.f32 %v1024, 0.0
    %v1041 = vmax.f32 %v1025, 0.0
    %v1042 = vmax.f32 %v1026, 0.0
    %v1043 = vmax.f32 %v1027, 0.0
    %v1044 = vmax.f32 %v1028, 0.0
    %v1045 = vmax.f32 %v1029, 0.0
    %v1046 = vmax.f32 %v1030, 0.0
    %v1047 = vmax.f32 %v1031, 0.0
    %v1048 = vmax.f32 %v1032, 0.0
    %v1049 = vmax.f32 %v1033, 0.0
    %v1050 = vmax.f32 %v1034, 0.0
    %v1051 = vmax.f32 %v1035, 0.0
    %v1052 = vmax.f32 %v1036, 0.0
    %v1053 = vmax.f32 %v1037, 0.0
    %v1054 = vadd.f32 %v611, %v1038
    %v1055 = vadd.f32 %v612, %v1039
    %v1056 = vadd.f32 %v613, %v1040
    %v1057 = vadd.f32 %v614, %v1041
    %v1058 = vadd.f32 %v615, %v1042
    %v1059 = vadd.f32 %v616, %v1043
    %v1060 = vadd.f32 %v617, %v1044
    %v1061 = vadd.f32 %v618, %v1045
    %v1062 = vadd.f32 %v619, %v1046
    %v1063 = vadd.f32 %v620, %v1047
    %v1064 = vadd.f32 %v621, %v1048
    %v1065 = vadd.f32 %v622, %v1049
    %v1066 = vadd.f32 %v623, %v1050
    %v1067 = vadd.f32 %v624, %v1051
    %v1068 = vadd.f32 %v625, %v1052
    %v1069 = vadd.f32 %v626, %v1053
    %v1070 = vpack.c.bf16 %v1055, %v1054
    %v1071 = vpack.c.bf16 %v1057, %v1056
    %v1072 = vpack.c.bf16 %v1059, %v1058
    %v1073 = vpack.c.bf16 %v1061, %v1060
    %v1074 = vpack.c.bf16 %v1063, %v1062
    %v1075 = vpack.c.bf16 %v1065, %v1064
    %v1076 = vpack.c.bf16 %v1067, %v1066
    %v1077 = vpack.c.bf16 %v1069, %v1068
    %v1078 = vld [vmem:[%s10] sm:$0xf]
    %v1079 = vld [vmem:[%s10 + $0x4] sm:$0xf]
    %v1080 = vld [vmem:[%s10 + $0x8] sm:$0xf]
    %v1081 = vld [vmem:[%s10 + $0xc] sm:$0xf]
    %v1082 = vld [vmem:[%s10 + $0x10] sm:$0xf]
    %v1083 = vld [vmem:[%s10 + $0x14] sm:$0xf]
    %v1084 = vld [vmem:[%s10 + $0x18] sm:$0xf]
    %v1085 = vld [vmem:[%s10 + $0x1c] sm:$0xf]
    %v1094 = vunpack.c.l.b16 %v1078
    %v1095 = vunpack.c.l.b16 %v1079
    %v1096 = vunpack.c.l.b16 %v1080
    %v1097 = vunpack.c.l.b16 %v1081
    %v1098 = vunpack.c.l.b16 %v1082
    %v1099 = vunpack.c.l.b16 %v1083
    %v1100 = vunpack.c.l.b16 %v1084
    %v1101 = vunpack.c.l.b16 %v1085
    %v1102 = vpack.c.b16 %v1095, %v1094
    %v1103 = vpack.c.b16 %v1097, %v1096
    %v1104 = vpack.c.b16 %v1099, %v1098
    %v1105 = vpack.c.b16 %v1101, %v1100
    %v1111 = vsel %vm175, %v1070, 0
    %v1114 = vsel %vm175, %v1071, 0
    %v1117 = vsel %vm175, %v1072, 0
    %v1120 = vsel %vm175, %v1073, 0
    %v1123 = vsel %vm175, %v1074, 0
    %v1126 = vsel %vm175, %v1075, 0
    %v1129 = vsel %vm175, %v1076, 0
    %v1132 = vsel %vm175, %v1077, 0
    %1134 = vmatprep.subr.bf16.mxu0 0
    %1135 = vmatpush1.bf16.msra.mxu0 %v1102
    %1136 = vmatprep.subr.bf16.mxu0 0
    %1137 = vmatpush1.bf16.msra.mxu0 %v1103
    %1138 = vmatprep.subr.bf16.mxu0 0
    %1139 = vmatpush1.bf16.msra.mxu0 %v1104
    %1140 = vmatprep.subr.bf16.mxu0 0
    %1141 = vmatpush1.bf16.msra.mxu0 %v1105
    %1142 = vmatprep.subr.bf16.mxu0 0
    %1143 = vmatpush1.bf16.msra.mxu0 0
    %1144 = vmatprep.subr.bf16.mxu0 0
    %1145 = vmatpush1.bf16.msra.mxu0 0
    %1146 = vmatprep.subr.bf16.mxu0 0
    %1147 = vmatpush1.bf16.msra.mxu0 0
    %1148 = vmatprep.subr.bf16.mxu0 0
    %1149 = vmatpush1.bf16.msra.mxu0 0
    %1150 = vmatprep.subr.bf16.mxu0 0
    %1151 = vmatpush1.bf16.msra.mxu0 0
    %1152 = vmatprep.subr.bf16.mxu0 0
    %1153 = vmatpush1.bf16.msra.mxu0 0
    %1154 = vmatprep.subr.bf16.mxu0 0
    %1155 = vmatpush1.bf16.msra.mxu0 0
    %1156 = vmatprep.subr.bf16.mxu0 0
    %1157 = vmatpush1.bf16.msra.mxu0 0
    %1158 = vmatprep.subr.bf16.mxu0 0
    %1159 = vmatpush1.bf16.msra.mxu0 0
    %1160 = vmatprep.subr.bf16.mxu0 0
    %1161 = vmatpush1.bf16.msra.mxu0 0
    %1162 = vmatprep.subr.bf16.mxu0 0
    %1163 = vmatpush1.bf16.msra.mxu0 0
    %1164 = vmatprep.subr.bf16.mxu0 0
    %1165 = vmatpush1.bf16.msra.mxu0 0
    %1166 = vmatprep.mubr.bf16.mxu0 0
    %1167 = vmatmul.mubr.bf16.gmra.mrb[0].mxu0 %v1111
    %v1168 = vpop.f32.mrb[0].mxu0
    %v1169 = vadd.f32 0.0, %v1168
    %v1170 = vpop.f32.mrb[0].mxu0
    %v1171 = vpop.f32.mrb[0].mxu0
    %v1172 = vadd.f32 0.0, %v1171
    %v1173 = vpop.f32.mrb[0].mxu0
    %1174 = vmatprep.mubr.bf16.mxu0 0
    %1175 = vmatmul.mubr.bf16.gmra.mrb[0].mxu0 %v1114
    %v1176 = vpop.f32.mrb[0].mxu0
    %v1177 = vadd.f32 0.0, %v1176
    %v1178 = vpop.f32.mrb[0].mxu0
    %v1179 = vpop.f32.mrb[0].mxu0
    %v1180 = vadd.f32 0.0, %v1179
    %v1181 = vpop.f32.mrb[0].mxu0
    %1182 = vmatprep.mubr.bf16.mxu0 0
    %1183 = vmatmul.mubr.bf16.gmra.mrb[0].mxu0 %v1117
    %v1184 = vpop.f32.mrb[0].mxu0
    %v1185 = vadd.f32 0.0, %v1184
    %v1186 = vpop.f32.mrb[0].mxu0
    %v1187 = vpop.f32.mrb[0].mxu0
    %v1188 = vadd.f32 0.0, %v1187
    %v1189 = vpop.f32.mrb[0].mxu0
    %1190 = vmatprep.mubr.bf16.mxu0 0
    %1191 = vmatmul.mubr.bf16.gmra.mrb[0].mxu0 %v1120
    %v1192 = vpop.f32.mrb[0].mxu0
    %v1193 = vadd.f32 0.0, %v1192
    %v1194 = vpop.f32.mrb[0].mxu0
    %v1195 = vpop.f32.mrb[0].mxu0
    %v1196 = vadd.f32 0.0, %v1195
    %v1197 = vpop.f32.mrb[0].mxu0
    %1198 = vmatprep.mubr.bf16.mxu0 0
    %1199 = vmatmul.mubr.bf16.gmra.mrb[0].mxu0 %v1123
    %v1200 = vpop.f32.mrb[0].mxu0
    %v1201 = vadd.f32 0.0, %v1200
    %v1202 = vpop.f32.mrb[0].mxu0
    %v1203 = vpop.f32.mrb[0].mxu0
    %v1204 = vadd.f32 0.0, %v1203
    %v1205 = vpop.f32.mrb[0].mxu0
    %1206 = vmatprep.mubr.bf16.mxu0 0
    %1207 = vmatmul.mubr.bf16.gmra.mrb[0].mxu0 %v1126
    %v1208 = vpop.f32.mrb[0].mxu0
    %v1209 = vadd.f32 0.0, %v1208
    %v1210 = vpop.f32.mrb[0].mxu0
    %v1211 = vpop.f32.mrb[0].mxu0
    %v1212 = vadd.f32 0.0, %v1211
    %v1213 = vpop.f32.mrb[0].mxu0
    %1214 = vmatprep.mubr.bf16.mxu0 0
    %1215 = vmatmul.mubr.bf16.gmra.mrb[0].mxu0 %v1129
    %v1216 = vpop.f32.mrb[0].mxu0
    %v1217 = vadd.f32 0.0, %v1216
    %v1218 = vpop.f32.mrb[0].mxu0
    %v1219 = vpop.f32.mrb[0].mxu0
    %v1220 = vadd.f32 0.0, %v1219
    %v1221 = vpop.f32.mrb[0].mxu0
    %1222 = vmatprep.mubr.bf16.mxu0 0
    %1223 = vmatmul.mubr.bf16.gmra.mrb[0].mxu0 %v1132
    %v1224 = vpop.f32.mrb[0].mxu0
    %v1225 = vadd.f32 0.0, %v1224
    %v1226 = vpop.f32.mrb[0].mxu0
    %v1227 = vpop.f32.mrb[0].mxu0
    %v1228 = vadd.f32 0.0, %v1227
    %v1229 = vpop.f32.mrb[0].mxu0
    %1230 = vdwg.mxu0
    %v1231 = vpack.c.bf16 %v1172, %v1169
    %v1232 = vpack.c.bf16 %v1180, %v1177
    %v1233 = vpack.c.bf16 %v1188, %v1185
    %v1234 = vpack.c.bf16 %v1196, %v1193
    %v1235 = vpack.c.bf16 %v1204, %v1201
    %v1236 = vpack.c.bf16 %v1212, %v1209
    %v1237 = vpack.c.bf16 %v1220, %v1217
    %v1238 = vpack.c.bf16 %v1228, %v1225
    %1239 = vmatprep.subr.bf16.mxu0 0
    %1240 = vmatpush1.bf16.msra.mxu0 %v1231
    %1241 = vmatprep.subr.bf16.mxu0 0
    %1242 = vmatpush1.bf16.msra.mxu0 %v1232
    %1243 = vmatprep.subr.bf16.mxu0 0
    %1244 = vmatpush1.bf16.msra.mxu0 %v1233
    %1245 = vmatprep.subr.bf16.mxu0 0
    %1246 = vmatpush1.bf16.msra.mxu0 %v1234
    %1247 = vmatprep.subr.bf16.mxu0 0
    %1248 = vmatpush1.bf16.msra.mxu0 %v1235
    %1249 = vmatprep.subr.bf16.mxu0 0
    %1250 = vmatpush1.bf16.msra.mxu0 %v1236
    %1251 = vmatprep.subr.bf16.mxu0 0
    %1252 = vmatpush1.bf16.msra.mxu0 %v1237
    %1253 = vmatprep.subr.bf16.mxu0 0
    %1254 = vmatpush1.bf16.msra.mxu0 %v1238
    %1255 = vmatprep.subr.bf16.mxu0 0
    %1256 = vmatpush1.bf16.msra.mxu0 0
    %1257 = vmatprep.subr.bf16.mxu0 0
    %1258 = vmatpush1.bf16.msra.mxu0 0
    %1259 = vmatprep.subr.bf16.mxu0 0
    %1260 = vmatpush1.bf16.msra.mxu0 0
    %1261 = vmatprep.subr.bf16.mxu0 0
    %1262 = vmatpush1.bf16.msra.mxu0 0
    %1263 = vmatprep.subr.bf16.mxu0 0
    %1264 = vmatpush1.bf16.msra.mxu0 0
    %1265 = vmatprep.subr.bf16.mxu0 0
    %1266 = vmatpush1.bf16.msra.mxu0 0
    %1267 = vmatprep.subr.bf16.mxu0 0
    %1268 = vmatpush1.bf16.msra.mxu0 0
    %1269 = vmatprep.subr.bf16.mxu0 0
    %1270 = vmatpush1.bf16.msra.mxu0 0
    %1271 = vmatprep.mubr.bf16.mxu0 0
    %1272 = vmatmul.mubr.bf16.gmra.mrb[0].mxu0 %v337
    %v1273 = vpop.f32.mrb[0].mxu0
    %v1274 = vadd.f32 0.0, %v1273
    %v1275 = vpop.f32.mrb[0].mxu0
    %v1276 = vpop.f32.mrb[0].mxu0
    %v1277 = vadd.f32 0.0, %v1276
    %v1278 = vpop.f32.mrb[0].mxu0
    %1279 = vmatprep.mubr.bf16.mxu0 0
    %1280 = vmatmul.mubr.bf16.gmra.mrb[0].mxu0 %v338
    %v1281 = vpop.f32.mrb[0].mxu0
    %v1282 = vadd.f32 0.0, %v1281
    %v1283 = vpop.f32.mrb[0].mxu0
    %v1284 = vpop.f32.mrb[0].mxu0
    %v1285 = vadd.f32 0.0, %v1284
    %v1286 = vpop.f32.mrb[0].mxu0
    %1287 = vmatprep.mubr.bf16.mxu0 0
    %1288 = vmatmul.mubr.bf16.gmra.mrb[0].mxu0 %v339
    %v1289 = vpop.f32.mrb[0].mxu0
    %v1290 = vadd.f32 0.0, %v1289
    %v1291 = vpop.f32.mrb[0].mxu0
    %v1292 = vpop.f32.mrb[0].mxu0
    %v1293 = vadd.f32 0.0, %v1292
    %v1294 = vpop.f32.mrb[0].mxu0
    %1295 = vmatprep.mubr.bf16.mxu0 0
    %1296 = vmatmul.mubr.bf16.gmra.mrb[0].mxu0 %v340
    %v1297 = vpop.f32.mrb[0].mxu0
    %v1298 = vadd.f32 0.0, %v1297
    %v1299 = vpop.f32.mrb[0].mxu0
    %v1300 = vpop.f32.mrb[0].mxu0
    %v1301 = vadd.f32 0.0, %v1300
    %v1302 = vpop.f32.mrb[0].mxu0
    %1303 = vmatprep.mubr.bf16.mxu0 0
    %1304 = vmatmul.mubr.bf16.gmra.mrb[0].mxu0 %v341
    %v1305 = vpop.f32.mrb[0].mxu0
    %v1306 = vadd.f32 0.0, %v1305
    %v1307 = vpop.f32.mrb[0].mxu0
    %v1308 = vpop.f32.mrb[0].mxu0
    %v1309 = vadd.f32 0.0, %v1308
    %v1310 = vpop.f32.mrb[0].mxu0
    %1311 = vmatprep.mubr.bf16.mxu0 0
    %1312 = vmatmul.mubr.bf16.gmra.mrb[0].mxu0 %v342
    %v1313 = vpop.f32.mrb[0].mxu0
    %v1314 = vadd.f32 0.0, %v1313
    %v1315 = vpop.f32.mrb[0].mxu0
    %v1316 = vpop.f32.mrb[0].mxu0
    %v1317 = vadd.f32 0.0, %v1316
    %v1318 = vpop.f32.mrb[0].mxu0
    %1319 = vmatprep.mubr.bf16.mxu0 0
    %1320 = vmatmul.mubr.bf16.gmra.mrb[0].mxu0 %v343
    %v1321 = vpop.f32.mrb[0].mxu0
    %v1322 = vadd.f32 0.0, %v1321
    %v1323 = vpop.f32.mrb[0].mxu0
    %v1324 = vpop.f32.mrb[0].mxu0
    %v1325 = vadd.f32 0.0, %v1324
    %v1326 = vpop.f32.mrb[0].mxu0
    %1327 = vmatprep.mubr.bf16.mxu0 0
    %1328 = vmatmul.mubr.bf16.gmra.mrb[0].mxu0 %v344
    %v1329 = vpop.f32.mrb[0].mxu0
    %v1330 = vadd.f32 0.0, %v1329
    %v1331 = vpop.f32.mrb[0].mxu0
    %v1332 = vpop.f32.mrb[0].mxu0
    %v1333 = vadd.f32 0.0, %v1332
    %v1334 = vpop.f32.mrb[0].mxu0
    %1335 = vdwg.mxu0
    %v1336 = vsel %vm175, %v1274, 0.0
    %v1337 = vsel %vm175, %v1277, 0.0
    %v1338 = vadd.f32 %v1336, %v1337
    %v1339 = vsel %vm175, %v1282, 0.0
    %v1340 = vadd.f32 %v1338, %v1339
    %v1341 = vsel %vm175, %v1285, 0.0
    %v1342 = vadd.f32 %v1340, %v1341
    %v1343 = vsel %vm175, %v1290, 0.0
    %v1344 = vadd.f32 %v1342, %v1343
    %v1345 = vsel %vm175, %v1293, 0.0
    %v1346 = vadd.f32 %v1344, %v1345
    %v1347 = vsel %vm175, %v1298, 0.0
    %v1348 = vadd.f32 %v1346, %v1347
    %v1349 = vsel %vm175, %v1301, 0.0
    %v1350 = vadd.f32 %v1348, %v1349
    %v1351 = vsel %vm175, %v1306, 0.0
    %v1352 = vadd.f32 %v1350, %v1351
    %v1353 = vsel %vm175, %v1309, 0.0
    %v1354 = vadd.f32 %v1352, %v1353
    %v1355 = vsel %vm175, %v1314, 0.0
    %v1356 = vadd.f32 %v1354, %v1355
    %v1357 = vsel %vm175, %v1317, 0.0
    %v1358 = vadd.f32 %v1356, %v1357
    %v1359 = vsel %vm175, %v1322, 0.0
    %v1360 = vadd.f32 %v1358, %v1359
    %v1361 = vsel %vm175, %v1325, 0.0
    %v1362 = vadd.f32 %v1360, %v1361
    %v1363 = vsel %vm175, %v1330, 0.0
    %v1364 = vadd.f32 %v1362, %v1363
    %v1365 = vsel %vm175, %v1333, 0.0
    %v1366 = vadd.f32 %v1364, %v1365
    %v1367 = vrot.slane %v1366, 4
    %v1368 = vadd.f32 %v1366, %v1367
    %v1369 = vrot.slane %v1368, 2
    %v1370 = vadd.f32 %v1368, %v1369
    %v1371 = vrot.slane %v1370, 1
    %v1372 = vadd.f32 %v1370, %v1371
    %v1373 = vmul.f32 %v1372, 0.0078125
    %v1374 = vmul.f32 %v1274, %v1274
    %v1375 = vmul.f32 %v1277, %v1277
    %v1376 = vmul.f32 %v1282, %v1282
    %v1377 = vmul.f32 %v1285, %v1285
    %v1378 = vmul.f32 %v1290, %v1290
    %v1379 = vmul.f32 %v1293, %v1293
    %v1380 = vmul.f32 %v1298, %v1298
    %v1381 = vmul.f32 %v1301, %v1301
    %v1382 = vmul.f32 %v1306, %v1306
    %v1383 = vmul.f32 %v1309, %v1309
    %v1384 = vmul.f32 %v1314, %v1314
    %v1385 = vmul.f32 %v1317, %v1317
    %v1386 = vmul.f32 %v1322, %v1322
    %v1387 = vmul.f32 %v1325, %v1325
    %v1388 = vmul.f32 %v1330, %v1330
    %v1389 = vmul.f32 %v1333, %v1333
    %v1390 = vsel %vm175, %v1374, 0.0
    %v1391 = vsel %vm175, %v1375, 0.0
    %v1392 = vadd.f32 %v1390, %v1391
    %v1393 = vsel %vm175, %v1376, 0.0
    %v1394 = vadd.f32 %v1392, %v1393
    %v1395 = vsel %vm175, %v1377, 0.0
    %v1396 = vadd.f32 %v1394, %v1395
    %v1397 = vsel %vm175, %v1378, 0.0
    %v1398 = vadd.f32 %v1396, %v1397
    %v1399 = vsel %vm175, %v1379, 0.0
    %v1400 = vadd.f32 %v1398, %v1399
    %v1401 = vsel %vm175, %v1380, 0.0
    %v1402 = vadd.f32 %v1400, %v1401
    %v1403 = vsel %vm175, %v1381, 0.0
    %v1404 = vadd.f32 %v1402, %v1403
    %v1405 = vsel %vm175, %v1382, 0.0
    %v1406 = vadd.f32 %v1404, %v1405
    %v1407 = vsel %vm175, %v1383, 0.0
    %v1408 = vadd.f32 %v1406, %v1407
    %v1409 = vsel %vm175, %v1384, 0.0
    %v1410 = vadd.f32 %v1408, %v1409
    %v1411 = vsel %vm175, %v1385, 0.0
    %v1412 = vadd.f32 %v1410, %v1411
    %v1413 = vsel %vm175, %v1386, 0.0
    %v1414 = vadd.f32 %v1412, %v1413
    %v1415 = vsel %vm175, %v1387, 0.0
    %v1416 = vadd.f32 %v1414, %v1415
    %v1417 = vsel %vm175, %v1388, 0.0
    %v1418 = vadd.f32 %v1416, %v1417
    %v1419 = vsel %vm175, %v1389, 0.0
    %v1420 = vadd.f32 %v1418, %v1419
    %v1421 = vrot.slane %v1420, 4
    %v1422 = vadd.f32 %v1420, %v1421
    %v1423 = vrot.slane %v1422, 2
    %v1424 = vadd.f32 %v1422, %v1423
    %v1425 = vrot.slane %v1424, 1
    %v1426 = vadd.f32 %v1424, %v1425
    %v1427 = vmul.f32 %v1426, 0.0078125
    %v1428 = vmul.f32 %v1373, %v1373
    %v1429 = vsub.f32 %v1427, %v1428
    %v1430 = vld [vmem:[%s12] sm:$0x1]
    %v1431 = vadd.f32 %v1429, 1e-05
    %v1432 = vrsqrt.pop %v1431
    %v1433 = vmul.f32 %v1430, %v1432
    %v1435 = vlaneseq
    %v1436 = vshrl.u32 %v1435, 7
    %v1437 = vsub.s32 0, %v1436
    %v1438 = vrot.slane %v1433, %v1437
    %v1440 = vmul.f32 %v1274, %v1438
    %v1441 = vmul.f32 %v1277, %v1438
    %v1442 = vmul.f32 %v1282, %v1438
    %v1443 = vmul.f32 %v1285, %v1438
    %v1444 = vmul.f32 %v1290, %v1438
    %v1445 = vmul.f32 %v1293, %v1438
    %v1446 = vmul.f32 %v1298, %v1438
    %v1447 = vmul.f32 %v1301, %v1438
    %v1448 = vmul.f32 %v1306, %v1438
    %v1449 = vmul.f32 %v1309, %v1438
    %v1450 = vmul.f32 %v1314, %v1438
    %v1451 = vmul.f32 %v1317, %v1438
    %v1452 = vmul.f32 %v1322, %v1438
    %v1453 = vmul.f32 %v1325, %v1438
    %v1454 = vmul.f32 %v1330, %v1438
    %v1455 = vmul.f32 %v1333, %v1438
    %v1456 = vld [vmem:[%s13] sm:$0x1]
    %v1457 = vmul.f32 %v1373, %v1433
    %v1458 = vsub.f32 %v1456, %v1457
    %v1460 = vlaneseq
    %v1461 = vshrl.u32 %v1460, 7
    %v1462 = vsub.s32 0, %v1461
    %v1463 = vrot.slane %v1458, %v1462
    %v1465 = vadd.f32 %v1440, %v1463
    %v1466 = vadd.f32 %v1441, %v1463
    %v1467 = vadd.f32 %v1442, %v1463
    %v1468 = vadd.f32 %v1443, %v1463
    %v1469 = vadd.f32 %v1444, %v1463
    %v1470 = vadd.f32 %v1445, %v1463
    %v1471 = vadd.f32 %v1446, %v1463
    %v1472 = vadd.f32 %v1447, %v1463
    %v1473 = vadd.f32 %v1448, %v1463
    %v1474 = vadd.f32 %v1449, %v1463
    %v1475 = vadd.f32 %v1450, %v1463
    %v1476 = vadd.f32 %v1451, %v1463
    %v1477 = vadd.f32 %v1452, %v1463
    %v1478 = vadd.f32 %v1453, %v1463
    %v1479 = vadd.f32 %v1454, %v1463
    %v1480 = vadd.f32 %v1455, %v1463
    %v1481 = vmax.f32 %v1465, 0.0
    %v1482 = vmax.f32 %v1466, 0.0
    %v1483 = vmax.f32 %v1467, 0.0
    %v1484 = vmax.f32 %v1468, 0.0
    %v1485 = vmax.f32 %v1469, 0.0
    %v1486 = vmax.f32 %v1470, 0.0
    %v1487 = vmax.f32 %v1471, 0.0
    %v1488 = vmax.f32 %v1472, 0.0
    %v1489 = vmax.f32 %v1473, 0.0
    %v1490 = vmax.f32 %v1474, 0.0
    %v1491 = vmax.f32 %v1475, 0.0
    %v1492 = vmax.f32 %v1476, 0.0
    %v1493 = vmax.f32 %v1477, 0.0
    %v1494 = vmax.f32 %v1478, 0.0
    %v1495 = vmax.f32 %v1479, 0.0
    %v1496 = vmax.f32 %v1480, 0.0
    %v1497 = vadd.f32 %v1054, %v1481
    %v1498 = vadd.f32 %v1055, %v1482
    %v1499 = vadd.f32 %v1056, %v1483
    %v1500 = vadd.f32 %v1057, %v1484
    %v1501 = vadd.f32 %v1058, %v1485
    %v1502 = vadd.f32 %v1059, %v1486
    %v1503 = vadd.f32 %v1060, %v1487
    %v1504 = vadd.f32 %v1061, %v1488
    %v1505 = vadd.f32 %v1062, %v1489
    %v1506 = vadd.f32 %v1063, %v1490
    %v1507 = vadd.f32 %v1064, %v1491
    %v1508 = vadd.f32 %v1065, %v1492
    %v1509 = vadd.f32 %v1066, %v1493
    %v1510 = vadd.f32 %v1067, %v1494
    %v1511 = vadd.f32 %v1068, %v1495
    %v1512 = vadd.f32 %v1069, %v1496
    %v1513 = vpack.c.bf16 %v1498, %v1497
    %v1514 = vpack.c.bf16 %v1500, %v1499
    %v1515 = vpack.c.bf16 %v1502, %v1501
    %v1516 = vpack.c.bf16 %v1504, %v1503
    %v1517 = vpack.c.bf16 %v1506, %v1505
    %v1518 = vpack.c.bf16 %v1508, %v1507
    %v1519 = vpack.c.bf16 %v1510, %v1509
    %v1520 = vpack.c.bf16 %v1512, %v1511
    %v1521 = vld [vmem:[%s14] sm:$0xf]
    %v1522 = vld [vmem:[%s14 + $0x4] sm:$0xf]
    %v1523 = vld [vmem:[%s14 + $0x8] sm:$0xf]
    %v1524 = vld [vmem:[%s14 + $0xc] sm:$0xf]
    %v1525 = vld [vmem:[%s14 + $0x10] sm:$0xf]
    %v1526 = vld [vmem:[%s14 + $0x14] sm:$0xf]
    %v1527 = vld [vmem:[%s14 + $0x18] sm:$0xf]
    %v1528 = vld [vmem:[%s14 + $0x1c] sm:$0xf]
    %v1537 = vunpack.c.l.b16 %v1521
    %v1538 = vunpack.c.l.b16 %v1522
    %v1539 = vunpack.c.l.b16 %v1523
    %v1540 = vunpack.c.l.b16 %v1524
    %v1541 = vunpack.c.l.b16 %v1525
    %v1542 = vunpack.c.l.b16 %v1526
    %v1543 = vunpack.c.l.b16 %v1527
    %v1544 = vunpack.c.l.b16 %v1528
    %v1545 = vpack.c.b16 %v1538, %v1537
    %v1546 = vpack.c.b16 %v1540, %v1539
    %v1547 = vpack.c.b16 %v1542, %v1541
    %v1548 = vpack.c.b16 %v1544, %v1543
    %v1554 = vsel %vm175, %v1513, 0
    %v1557 = vsel %vm175, %v1514, 0
    %v1560 = vsel %vm175, %v1515, 0
    %v1563 = vsel %vm175, %v1516, 0
    %v1566 = vsel %vm175, %v1517, 0
    %v1569 = vsel %vm175, %v1518, 0
    %v1572 = vsel %vm175, %v1519, 0
    %v1575 = vsel %vm175, %v1520, 0
    %1577 = vmatprep.subr.bf16.mxu0 0
    %1578 = vmatpush1.bf16.msra.mxu0 %v1545
    %1579 = vmatprep.subr.bf16.mxu0 0
    %1580 = vmatpush1.bf16.msra.mxu0 %v1546
    %1581 = vmatprep.subr.bf16.mxu0 0
    %1582 = vmatpush1.bf16.msra.mxu0 %v1547
    %1583 = vmatprep.subr.bf16.mxu0 0
    %1584 = vmatpush1.bf16.msra.mxu0 %v1548
    %1585 = vmatprep.subr.bf16.mxu0 0
    %1586 = vmatpush1.bf16.msra.mxu0 0
    %1587 = vmatprep.subr.bf16.mxu0 0
    %1588 = vmatpush1.bf16.msra.mxu0 0
    %1589 = vmatprep.subr.bf16.mxu0 0
    %1590 = vmatpush1.bf16.msra.mxu0 0
    %1591 = vmatprep.subr.bf16.mxu0 0
    %1592 = vmatpush1.bf16.msra.mxu0 0
    %1593 = vmatprep.subr.bf16.mxu0 0
    %1594 = vmatpush1.bf16.msra.mxu0 0
    %1595 = vmatprep.subr.bf16.mxu0 0
    %1596 = vmatpush1.bf16.msra.mxu0 0
    %1597 = vmatprep.subr.bf16.mxu0 0
    %1598 = vmatpush1.bf16.msra.mxu0 0
    %1599 = vmatprep.subr.bf16.mxu0 0
    %1600 = vmatpush1.bf16.msra.mxu0 0
    %1601 = vmatprep.subr.bf16.mxu0 0
    %1602 = vmatpush1.bf16.msra.mxu0 0
    %1603 = vmatprep.subr.bf16.mxu0 0
    %1604 = vmatpush1.bf16.msra.mxu0 0
    %1605 = vmatprep.subr.bf16.mxu0 0
    %1606 = vmatpush1.bf16.msra.mxu0 0
    %1607 = vmatprep.subr.bf16.mxu0 0
    %1608 = vmatpush1.bf16.msra.mxu0 0
    %1609 = vmatprep.mubr.bf16.mxu0 0
    %1610 = vmatmul.mubr.bf16.gmra.mrb[0].mxu0 %v1554
    %v1611 = vpop.f32.mrb[0].mxu0
    %v1612 = vadd.f32 0.0, %v1611
    %v1613 = vpop.f32.mrb[0].mxu0
    %v1614 = vpop.f32.mrb[0].mxu0
    %v1615 = vadd.f32 0.0, %v1614
    %v1616 = vpop.f32.mrb[0].mxu0
    %1617 = vmatprep.mubr.bf16.mxu0 0
    %1618 = vmatmul.mubr.bf16.gmra.mrb[0].mxu0 %v1557
    %v1619 = vpop.f32.mrb[0].mxu0
    %v1620 = vadd.f32 0.0, %v1619
    %v1621 = vpop.f32.mrb[0].mxu0
    %v1622 = vpop.f32.mrb[0].mxu0
    %v1623 = vadd.f32 0.0, %v1622
    %v1624 = vpop.f32.mrb[0].mxu0
    %1625 = vmatprep.mubr.bf16.mxu0 0
    %1626 = vmatmul.mubr.bf16.gmra.mrb[0].mxu0 %v1560
    %v1627 = vpop.f32.mrb[0].mxu0
    %v1628 = vadd.f32 0.0, %v1627
    %v1629 = vpop.f32.mrb[0].mxu0
    %v1630 = vpop.f32.mrb[0].mxu0
    %v1631 = vadd.f32 0.0, %v1630
    %v1632 = vpop.f32.mrb[0].mxu0
    %1633 = vmatprep.mubr.bf16.mxu0 0
    %1634 = vmatmul.mubr.bf16.gmra.mrb[0].mxu0 %v1563
    %v1635 = vpop.f32.mrb[0].mxu0
    %v1636 = vadd.f32 0.0, %v1635
    %v1637 = vpop.f32.mrb[0].mxu0
    %v1638 = vpop.f32.mrb[0].mxu0
    %v1639 = vadd.f32 0.0, %v1638
    %v1640 = vpop.f32.mrb[0].mxu0
    %1641 = vmatprep.mubr.bf16.mxu0 0
    %1642 = vmatmul.mubr.bf16.gmra.mrb[0].mxu0 %v1566
    %v1643 = vpop.f32.mrb[0].mxu0
    %v1644 = vadd.f32 0.0, %v1643
    %v1645 = vpop.f32.mrb[0].mxu0
    %v1646 = vpop.f32.mrb[0].mxu0
    %v1647 = vadd.f32 0.0, %v1646
    %v1648 = vpop.f32.mrb[0].mxu0
    %1649 = vmatprep.mubr.bf16.mxu0 0
    %1650 = vmatmul.mubr.bf16.gmra.mrb[0].mxu0 %v1569
    %v1651 = vpop.f32.mrb[0].mxu0
    %v1652 = vadd.f32 0.0, %v1651
    %v1653 = vpop.f32.mrb[0].mxu0
    %v1654 = vpop.f32.mrb[0].mxu0
    %v1655 = vadd.f32 0.0, %v1654
    %v1656 = vpop.f32.mrb[0].mxu0
    %1657 = vmatprep.mubr.bf16.mxu0 0
    %1658 = vmatmul.mubr.bf16.gmra.mrb[0].mxu0 %v1572
    %v1659 = vpop.f32.mrb[0].mxu0
    %v1660 = vadd.f32 0.0, %v1659
    %v1661 = vpop.f32.mrb[0].mxu0
    %v1662 = vpop.f32.mrb[0].mxu0
    %v1663 = vadd.f32 0.0, %v1662
    %v1664 = vpop.f32.mrb[0].mxu0
    %1665 = vmatprep.mubr.bf16.mxu0 0
    %1666 = vmatmul.mubr.bf16.gmra.mrb[0].mxu0 %v1575
    %v1667 = vpop.f32.mrb[0].mxu0
    %v1668 = vadd.f32 0.0, %v1667
    %v1669 = vpop.f32.mrb[0].mxu0
    %v1670 = vpop.f32.mrb[0].mxu0
    %v1671 = vadd.f32 0.0, %v1670
    %v1672 = vpop.f32.mrb[0].mxu0
    %1673 = vdwg.mxu0
    %v1674 = vpack.c.bf16 %v1615, %v1612
    %v1675 = vpack.c.bf16 %v1623, %v1620
    %v1676 = vpack.c.bf16 %v1631, %v1628
    %v1677 = vpack.c.bf16 %v1639, %v1636
    %v1678 = vpack.c.bf16 %v1647, %v1644
    %v1679 = vpack.c.bf16 %v1655, %v1652
    %v1680 = vpack.c.bf16 %v1663, %v1660
    %v1681 = vpack.c.bf16 %v1671, %v1668
    %1682 = vmatprep.subr.bf16.mxu0 0
    %1683 = vmatpush1.bf16.msra.mxu0 %v1674
    %1684 = vmatprep.subr.bf16.mxu0 0
    %1685 = vmatpush1.bf16.msra.mxu0 %v1675
    %1686 = vmatprep.subr.bf16.mxu0 0
    %1687 = vmatpush1.bf16.msra.mxu0 %v1676
    %1688 = vmatprep.subr.bf16.mxu0 0
    %1689 = vmatpush1.bf16.msra.mxu0 %v1677
    %1690 = vmatprep.subr.bf16.mxu0 0
    %1691 = vmatpush1.bf16.msra.mxu0 %v1678
    %1692 = vmatprep.subr.bf16.mxu0 0
    %1693 = vmatpush1.bf16.msra.mxu0 %v1679
    %1694 = vmatprep.subr.bf16.mxu0 0
    %1695 = vmatpush1.bf16.msra.mxu0 %v1680
    %1696 = vmatprep.subr.bf16.mxu0 0
    %1697 = vmatpush1.bf16.msra.mxu0 %v1681
    %1698 = vmatprep.subr.bf16.mxu0 0
    %1699 = vmatpush1.bf16.msra.mxu0 0
    %1700 = vmatprep.subr.bf16.mxu0 0
    %1701 = vmatpush1.bf16.msra.mxu0 0
    %1702 = vmatprep.subr.bf16.mxu0 0
    %1703 = vmatpush1.bf16.msra.mxu0 0
    %1704 = vmatprep.subr.bf16.mxu0 0
    %1705 = vmatpush1.bf16.msra.mxu0 0
    %1706 = vmatprep.subr.bf16.mxu0 0
    %1707 = vmatpush1.bf16.msra.mxu0 0
    %1708 = vmatprep.subr.bf16.mxu0 0
    %1709 = vmatpush1.bf16.msra.mxu0 0
    %1710 = vmatprep.subr.bf16.mxu0 0
    %1711 = vmatpush1.bf16.msra.mxu0 0
    %1712 = vmatprep.subr.bf16.mxu0 0
    %1713 = vmatpush1.bf16.msra.mxu0 0
    %1714 = vmatprep.mubr.bf16.mxu0 0
    %1715 = vmatmul.mubr.bf16.gmra.mrb[0].mxu0 %v337
    %v1716 = vpop.f32.mrb[0].mxu0
    %v1717 = vadd.f32 0.0, %v1716
    %v1718 = vpop.f32.mrb[0].mxu0
    %v1719 = vpop.f32.mrb[0].mxu0
    %v1720 = vadd.f32 0.0, %v1719
    %v1721 = vpop.f32.mrb[0].mxu0
    %1722 = vmatprep.mubr.bf16.mxu0 0
    %1723 = vmatmul.mubr.bf16.gmra.mrb[0].mxu0 %v338
    %v1724 = vpop.f32.mrb[0].mxu0
    %v1725 = vadd.f32 0.0, %v1724
    %v1726 = vpop.f32.mrb[0].mxu0
    %v1727 = vpop.f32.mrb[0].mxu0
    %v1728 = vadd.f32 0.0, %v1727
    %v1729 = vpop.f32.mrb[0].mxu0
    %1730 = vmatprep.mubr.bf16.mxu0 0
    %1731 = vmatmul.mubr.bf16.gmra.mrb[0].mxu0 %v339
    %v1732 = vpop.f32.mrb[0].mxu0
    %v1733 = vadd.f32 0.0, %v1732
    %v1734 = vpop.f32.mrb[0].mxu0
    %v1735 = vpop.f32.mrb[0].mxu0
    %v1736 = vadd.f32 0.0, %v1735
    %v1737 = vpop.f32.mrb[0].mxu0
    %1738 = vmatprep.mubr.bf16.mxu0 0
    %1739 = vmatmul.mubr.bf16.gmra.mrb[0].mxu0 %v340
    %v1740 = vpop.f32.mrb[0].mxu0
    %v1741 = vadd.f32 0.0, %v1740
    %v1742 = vpop.f32.mrb[0].mxu0
    %v1743 = vpop.f32.mrb[0].mxu0
    %v1744 = vadd.f32 0.0, %v1743
    %v1745 = vpop.f32.mrb[0].mxu0
    %1746 = vmatprep.mubr.bf16.mxu0 0
    %1747 = vmatmul.mubr.bf16.gmra.mrb[0].mxu0 %v341
    %v1748 = vpop.f32.mrb[0].mxu0
    %v1749 = vadd.f32 0.0, %v1748
    %v1750 = vpop.f32.mrb[0].mxu0
    %v1751 = vpop.f32.mrb[0].mxu0
    %v1752 = vadd.f32 0.0, %v1751
    %v1753 = vpop.f32.mrb[0].mxu0
    %1754 = vmatprep.mubr.bf16.mxu0 0
    %1755 = vmatmul.mubr.bf16.gmra.mrb[0].mxu0 %v342
    %v1756 = vpop.f32.mrb[0].mxu0
    %v1757 = vadd.f32 0.0, %v1756
    %v1758 = vpop.f32.mrb[0].mxu0
    %v1759 = vpop.f32.mrb[0].mxu0
    %v1760 = vadd.f32 0.0, %v1759
    %v1761 = vpop.f32.mrb[0].mxu0
    %1762 = vmatprep.mubr.bf16.mxu0 0
    %1763 = vmatmul.mubr.bf16.gmra.mrb[0].mxu0 %v343
    %v1764 = vpop.f32.mrb[0].mxu0
    %v1765 = vadd.f32 0.0, %v1764
    %v1766 = vpop.f32.mrb[0].mxu0
    %v1767 = vpop.f32.mrb[0].mxu0
    %v1768 = vadd.f32 0.0, %v1767
    %v1769 = vpop.f32.mrb[0].mxu0
    %1770 = vmatprep.mubr.bf16.mxu0 0
    %1771 = vmatmul.mubr.bf16.gmra.mrb[0].mxu0 %v344
    %v1772 = vpop.f32.mrb[0].mxu0
    %v1773 = vadd.f32 0.0, %v1772
    %v1774 = vpop.f32.mrb[0].mxu0
    %v1775 = vpop.f32.mrb[0].mxu0
    %v1776 = vadd.f32 0.0, %v1775
    %v1777 = vpop.f32.mrb[0].mxu0
    %1778 = vdwg.mxu0
    %v1779 = vsel %vm175, %v1717, 0.0
    %v1780 = vsel %vm175, %v1720, 0.0
    %v1781 = vadd.f32 %v1779, %v1780
    %v1782 = vsel %vm175, %v1725, 0.0
    %v1783 = vadd.f32 %v1781, %v1782
    %v1784 = vsel %vm175, %v1728, 0.0
    %v1785 = vadd.f32 %v1783, %v1784
    %v1786 = vsel %vm175, %v1733, 0.0
    %v1787 = vadd.f32 %v1785, %v1786
    %v1788 = vsel %vm175, %v1736, 0.0
    %v1789 = vadd.f32 %v1787, %v1788
    %v1790 = vsel %vm175, %v1741, 0.0
    %v1791 = vadd.f32 %v1789, %v1790
    %v1792 = vsel %vm175, %v1744, 0.0
    %v1793 = vadd.f32 %v1791, %v1792
    %v1794 = vsel %vm175, %v1749, 0.0
    %v1795 = vadd.f32 %v1793, %v1794
    %v1796 = vsel %vm175, %v1752, 0.0
    %v1797 = vadd.f32 %v1795, %v1796
    %v1798 = vsel %vm175, %v1757, 0.0
    %v1799 = vadd.f32 %v1797, %v1798
    %v1800 = vsel %vm175, %v1760, 0.0
    %v1801 = vadd.f32 %v1799, %v1800
    %v1802 = vsel %vm175, %v1765, 0.0
    %v1803 = vadd.f32 %v1801, %v1802
    %v1804 = vsel %vm175, %v1768, 0.0
    %v1805 = vadd.f32 %v1803, %v1804
    %v1806 = vsel %vm175, %v1773, 0.0
    %v1807 = vadd.f32 %v1805, %v1806
    %v1808 = vsel %vm175, %v1776, 0.0
    %v1809 = vadd.f32 %v1807, %v1808
    %v1810 = vrot.slane %v1809, 4
    %v1811 = vadd.f32 %v1809, %v1810
    %v1812 = vrot.slane %v1811, 2
    %v1813 = vadd.f32 %v1811, %v1812
    %v1814 = vrot.slane %v1813, 1
    %v1815 = vadd.f32 %v1813, %v1814
    %v1816 = vmul.f32 %v1815, 0.0078125
    %v1817 = vmul.f32 %v1717, %v1717
    %v1818 = vmul.f32 %v1720, %v1720
    %v1819 = vmul.f32 %v1725, %v1725
    %v1820 = vmul.f32 %v1728, %v1728
    %v1821 = vmul.f32 %v1733, %v1733
    %v1822 = vmul.f32 %v1736, %v1736
    %v1823 = vmul.f32 %v1741, %v1741
    %v1824 = vmul.f32 %v1744, %v1744
    %v1825 = vmul.f32 %v1749, %v1749
    %v1826 = vmul.f32 %v1752, %v1752
    %v1827 = vmul.f32 %v1757, %v1757
    %v1828 = vmul.f32 %v1760, %v1760
    %v1829 = vmul.f32 %v1765, %v1765
    %v1830 = vmul.f32 %v1768, %v1768
    %v1831 = vmul.f32 %v1773, %v1773
    %v1832 = vmul.f32 %v1776, %v1776
    %v1833 = vsel %vm175, %v1817, 0.0
    %v1834 = vsel %vm175, %v1818, 0.0
    %v1835 = vadd.f32 %v1833, %v1834
    %v1836 = vsel %vm175, %v1819, 0.0
    %v1837 = vadd.f32 %v1835, %v1836
    %v1838 = vsel %vm175, %v1820, 0.0
    %v1839 = vadd.f32 %v1837, %v1838
    %v1840 = vsel %vm175, %v1821, 0.0
    %v1841 = vadd.f32 %v1839, %v1840
    %v1842 = vsel %vm175, %v1822, 0.0
    %v1843 = vadd.f32 %v1841, %v1842
    %v1844 = vsel %vm175, %v1823, 0.0
    %v1845 = vadd.f32 %v1843, %v1844
    %v1846 = vsel %vm175, %v1824, 0.0
    %v1847 = vadd.f32 %v1845, %v1846
    %v1848 = vsel %vm175, %v1825, 0.0
    %v1849 = vadd.f32 %v1847, %v1848
    %v1850 = vsel %vm175, %v1826, 0.0
    %v1851 = vadd.f32 %v1849, %v1850
    %v1852 = vsel %vm175, %v1827, 0.0
    %v1853 = vadd.f32 %v1851, %v1852
    %v1854 = vsel %vm175, %v1828, 0.0
    %v1855 = vadd.f32 %v1853, %v1854
    %v1856 = vsel %vm175, %v1829, 0.0
    %v1857 = vadd.f32 %v1855, %v1856
    %v1858 = vsel %vm175, %v1830, 0.0
    %v1859 = vadd.f32 %v1857, %v1858
    %v1860 = vsel %vm175, %v1831, 0.0
    %v1861 = vadd.f32 %v1859, %v1860
    %v1862 = vsel %vm175, %v1832, 0.0
    %v1863 = vadd.f32 %v1861, %v1862
    %v1864 = vrot.slane %v1863, 4
    %v1865 = vadd.f32 %v1863, %v1864
    %v1866 = vrot.slane %v1865, 2
    %v1867 = vadd.f32 %v1865, %v1866
    %v1868 = vrot.slane %v1867, 1
    %v1869 = vadd.f32 %v1867, %v1868
    %v1870 = vmul.f32 %v1869, 0.0078125
    %v1871 = vmul.f32 %v1816, %v1816
    %v1872 = vsub.f32 %v1870, %v1871
    %v1873 = vld [vmem:[%s16] sm:$0x1]
    %v1874 = vadd.f32 %v1872, 1e-05
    %v1875 = vrsqrt.pop %v1874
    %v1876 = vmul.f32 %v1873, %v1875
    %v1878 = vlaneseq
    %v1879 = vshrl.u32 %v1878, 7
    %v1880 = vsub.s32 0, %v1879
    %v1881 = vrot.slane %v1876, %v1880
    %v1883 = vmul.f32 %v1717, %v1881
    %v1884 = vmul.f32 %v1720, %v1881
    %v1885 = vmul.f32 %v1725, %v1881
    %v1886 = vmul.f32 %v1728, %v1881
    %v1887 = vmul.f32 %v1733, %v1881
    %v1888 = vmul.f32 %v1736, %v1881
    %v1889 = vmul.f32 %v1741, %v1881
    %v1890 = vmul.f32 %v1744, %v1881
    %v1891 = vmul.f32 %v1749, %v1881
    %v1892 = vmul.f32 %v1752, %v1881
    %v1893 = vmul.f32 %v1757, %v1881
    %v1894 = vmul.f32 %v1760, %v1881
    %v1895 = vmul.f32 %v1765, %v1881
    %v1896 = vmul.f32 %v1768, %v1881
    %v1897 = vmul.f32 %v1773, %v1881
    %v1898 = vmul.f32 %v1776, %v1881
    %v1899 = vld [vmem:[%s17] sm:$0x1]
    %v1900 = vmul.f32 %v1816, %v1876
    %v1901 = vsub.f32 %v1899, %v1900
    %v1903 = vlaneseq
    %v1904 = vshrl.u32 %v1903, 7
    %v1905 = vsub.s32 0, %v1904
    %v1906 = vrot.slane %v1901, %v1905
    %v1908 = vadd.f32 %v1883, %v1906
    %v1909 = vadd.f32 %v1884, %v1906
    %v1910 = vadd.f32 %v1885, %v1906
    %v1911 = vadd.f32 %v1886, %v1906
    %v1912 = vadd.f32 %v1887, %v1906
    %v1913 = vadd.f32 %v1888, %v1906
    %v1914 = vadd.f32 %v1889, %v1906
    %v1915 = vadd.f32 %v1890, %v1906
    %v1916 = vadd.f32 %v1891, %v1906
    %v1917 = vadd.f32 %v1892, %v1906
    %v1918 = vadd.f32 %v1893, %v1906
    %v1919 = vadd.f32 %v1894, %v1906
    %v1920 = vadd.f32 %v1895, %v1906
    %v1921 = vadd.f32 %v1896, %v1906
    %v1922 = vadd.f32 %v1897, %v1906
    %v1923 = vadd.f32 %v1898, %v1906
    %v1924 = vmax.f32 %v1908, 0.0
    %v1925 = vmax.f32 %v1909, 0.0
    %v1926 = vmax.f32 %v1910, 0.0
    %v1927 = vmax.f32 %v1911, 0.0
    %v1928 = vmax.f32 %v1912, 0.0
    %v1929 = vmax.f32 %v1913, 0.0
    %v1930 = vmax.f32 %v1914, 0.0
    %v1931 = vmax.f32 %v1915, 0.0
    %v1932 = vmax.f32 %v1916, 0.0
    %v1933 = vmax.f32 %v1917, 0.0
    %v1934 = vmax.f32 %v1918, 0.0
    %v1935 = vmax.f32 %v1919, 0.0
    %v1936 = vmax.f32 %v1920, 0.0
    %v1937 = vmax.f32 %v1921, 0.0
    %v1938 = vmax.f32 %v1922, 0.0
    %v1939 = vmax.f32 %v1923, 0.0
    %v1940 = vadd.f32 %v1497, %v1924
    %v1941 = vadd.f32 %v1498, %v1925
    %v1942 = vadd.f32 %v1499, %v1926
    %v1943 = vadd.f32 %v1500, %v1927
    %v1944 = vadd.f32 %v1501, %v1928
    %v1945 = vadd.f32 %v1502, %v1929
    %v1946 = vadd.f32 %v1503, %v1930
    %v1947 = vadd.f32 %v1504, %v1931
    %v1948 = vadd.f32 %v1505, %v1932
    %v1949 = vadd.f32 %v1506, %v1933
    %v1950 = vadd.f32 %v1507, %v1934
    %v1951 = vadd.f32 %v1508, %v1935
    %v1952 = vadd.f32 %v1509, %v1936
    %v1953 = vadd.f32 %v1510, %v1937
    %v1954 = vadd.f32 %v1511, %v1938
    %v1955 = vadd.f32 %v1512, %v1939
    %v1956 = vpack.c.bf16 %v1941, %v1940
    %v1957 = vpack.c.bf16 %v1943, %v1942
    %v1958 = vpack.c.bf16 %v1945, %v1944
    %v1959 = vpack.c.bf16 %v1947, %v1946
    %v1960 = vpack.c.bf16 %v1949, %v1948
    %v1961 = vpack.c.bf16 %v1951, %v1950
    %v1962 = vpack.c.bf16 %v1953, %v1952
    %v1963 = vpack.c.bf16 %v1955, %v1954
    %v1964 = vld [vmem:[%s18] sm:$0xf]
    %v1965 = vld [vmem:[%s18 + $0x4] sm:$0xf]
    %v1966 = vld [vmem:[%s18 + $0x8] sm:$0xf]
    %v1967 = vld [vmem:[%s18 + $0xc] sm:$0xf]
    %v1968 = vld [vmem:[%s18 + $0x10] sm:$0xf]
    %v1969 = vld [vmem:[%s18 + $0x14] sm:$0xf]
    %v1970 = vld [vmem:[%s18 + $0x18] sm:$0xf]
    %v1971 = vld [vmem:[%s18 + $0x1c] sm:$0xf]
    %v1972 = vld [vmem:[%s19] sm:$0x1]
    %v1974 = vlaneseq
    %v1975 = vshrl.u32 %v1974, 7
    %v1976 = vsub.s32 0, %v1975
    %v1977 = vrot.slane %v1972, %v1976
    %v1987 = vunpack.c.l.b16 %v1964
    %v1988 = vunpack.c.l.b16 %v1965
    %v1989 = vunpack.c.l.b16 %v1966
    %v1990 = vunpack.c.l.b16 %v1967
    %v1991 = vunpack.c.l.b16 %v1968
    %v1992 = vunpack.c.l.b16 %v1969
    %v1993 = vunpack.c.l.b16 %v1970
    %v1994 = vunpack.c.l.b16 %v1971
    %v1995 = vpack.c.b16 %v1988, %v1987
    %v1996 = vpack.c.b16 %v1990, %v1989
    %v1997 = vpack.c.b16 %v1992, %v1991
    %v1998 = vpack.c.b16 %v1994, %v1993
    %v2004 = vsel %vm175, %v1956, 0
    %v2007 = vsel %vm175, %v1957, 0
    %v2010 = vsel %vm175, %v1958, 0
    %v2013 = vsel %vm175, %v1959, 0
    %v2016 = vsel %vm175, %v1960, 0
    %v2019 = vsel %vm175, %v1961, 0
    %v2022 = vsel %vm175, %v1962, 0
    %v2025 = vsel %vm175, %v1963, 0
    %2027 = vmatprep.subr.bf16.mxu0 0
    %2028 = vmatpush1.bf16.msra.mxu0 %v1995
    %2029 = vmatprep.subr.bf16.mxu0 0
    %2030 = vmatpush1.bf16.msra.mxu0 %v1996
    %2031 = vmatprep.subr.bf16.mxu0 0
    %2032 = vmatpush1.bf16.msra.mxu0 %v1997
    %2033 = vmatprep.subr.bf16.mxu0 0
    %2034 = vmatpush1.bf16.msra.mxu0 %v1998
    %2035 = vmatprep.subr.bf16.mxu0 0
    %2036 = vmatpush1.bf16.msra.mxu0 0
    %2037 = vmatprep.subr.bf16.mxu0 0
    %2038 = vmatpush1.bf16.msra.mxu0 0
    %2039 = vmatprep.subr.bf16.mxu0 0
    %2040 = vmatpush1.bf16.msra.mxu0 0
    %2041 = vmatprep.subr.bf16.mxu0 0
    %2042 = vmatpush1.bf16.msra.mxu0 0
    %2043 = vmatprep.subr.bf16.mxu0 0
    %2044 = vmatpush1.bf16.msra.mxu0 0
    %2045 = vmatprep.subr.bf16.mxu0 0
    %2046 = vmatpush1.bf16.msra.mxu0 0
    %2047 = vmatprep.subr.bf16.mxu0 0
    %2048 = vmatpush1.bf16.msra.mxu0 0
    %2049 = vmatprep.subr.bf16.mxu0 0
    %2050 = vmatpush1.bf16.msra.mxu0 0
    %2051 = vmatprep.subr.bf16.mxu0 0
    %2052 = vmatpush1.bf16.msra.mxu0 0
    %2053 = vmatprep.subr.bf16.mxu0 0
    %2054 = vmatpush1.bf16.msra.mxu0 0
    %2055 = vmatprep.subr.bf16.mxu0 0
    %2056 = vmatpush1.bf16.msra.mxu0 0
    %2057 = vmatprep.subr.bf16.mxu0 0
    %2058 = vmatpush1.bf16.msra.mxu0 0
    %2059 = vmatprep.mubr.bf16.mxu0 0
    %2060 = vmatmul.mubr.bf16.gmra.mrb[0].mxu0 %v2004
    %v2061 = vpop.f32.mrb[0].mxu0
    %v2062 = vadd.f32 %v1977, %v2061
    %v2063 = vpop.f32.mrb[0].mxu0
    %v2064 = vpop.f32.mrb[0].mxu0
    %v2065 = vadd.f32 %v1977, %v2064
    %v2066 = vpop.f32.mrb[0].mxu0
    %2067 = vmatprep.mubr.bf16.mxu0 0
    %2068 = vmatmul.mubr.bf16.gmra.mrb[0].mxu0 %v2007
    %v2069 = vpop.f32.mrb[0].mxu0
    %v2070 = vadd.f32 %v1977, %v2069
    %v2071 = vpop.f32.mrb[0].mxu0
    %v2072 = vpop.f32.mrb[0].mxu0
    %v2073 = vadd.f32 %v1977, %v2072
    %v2074 = vpop.f32.mrb[0].mxu0
    %2075 = vmatprep.mubr.bf16.mxu0 0
    %2076 = vmatmul.mubr.bf16.gmra.mrb[0].mxu0 %v2010
    %v2077 = vpop.f32.mrb[0].mxu0
    %v2078 = vadd.f32 %v1977, %v2077
    %v2079 = vpop.f32.mrb[0].mxu0
    %v2080 = vpop.f32.mrb[0].mxu0
    %v2081 = vadd.f32 %v1977, %v2080
    %v2082 = vpop.f32.mrb[0].mxu0
    %2083 = vmatprep.mubr.bf16.mxu0 0
    %2084 = vmatmul.mubr.bf16.gmra.mrb[0].mxu0 %v2013
    %v2085 = vpop.f32.mrb[0].mxu0
    %v2086 = vadd.f32 %v1977, %v2085
    %v2087 = vpop.f32.mrb[0].mxu0
    %v2088 = vpop.f32.mrb[0].mxu0
    %v2089 = vadd.f32 %v1977, %v2088
    %v2090 = vpop.f32.mrb[0].mxu0
    %2091 = vmatprep.mubr.bf16.mxu0 0
    %2092 = vmatmul.mubr.bf16.gmra.mrb[0].mxu0 %v2016
    %v2093 = vpop.f32.mrb[0].mxu0
    %v2094 = vadd.f32 %v1977, %v2093
    %v2095 = vpop.f32.mrb[0].mxu0
    %v2096 = vpop.f32.mrb[0].mxu0
    %v2097 = vadd.f32 %v1977, %v2096
    %v2098 = vpop.f32.mrb[0].mxu0
    %2099 = vmatprep.mubr.bf16.mxu0 0
    %2100 = vmatmul.mubr.bf16.gmra.mrb[0].mxu0 %v2019
    %v2101 = vpop.f32.mrb[0].mxu0
    %v2102 = vadd.f32 %v1977, %v2101
    %v2103 = vpop.f32.mrb[0].mxu0
    %v2104 = vpop.f32.mrb[0].mxu0
    %v2105 = vadd.f32 %v1977, %v2104
    %v2106 = vpop.f32.mrb[0].mxu0
    %2107 = vmatprep.mubr.bf16.mxu0 0
    %2108 = vmatmul.mubr.bf16.gmra.mrb[0].mxu0 %v2022
    %v2109 = vpop.f32.mrb[0].mxu0
    %v2110 = vadd.f32 %v1977, %v2109
    %v2111 = vpop.f32.mrb[0].mxu0
    %v2112 = vpop.f32.mrb[0].mxu0
    %v2113 = vadd.f32 %v1977, %v2112
    %v2114 = vpop.f32.mrb[0].mxu0
    %2115 = vmatprep.mubr.bf16.mxu0 0
    %2116 = vmatmul.mubr.bf16.gmra.mrb[0].mxu0 %v2025
    %v2117 = vpop.f32.mrb[0].mxu0
    %v2118 = vadd.f32 %v1977, %v2117
    %v2119 = vpop.f32.mrb[0].mxu0
    %v2120 = vpop.f32.mrb[0].mxu0
    %v2121 = vadd.f32 %v1977, %v2120
    %v2122 = vpop.f32.mrb[0].mxu0
    %2123 = vdwg.mxu0
    %v2124 = vmax.f32 %v2062, 0.0
    %v2125 = vmax.f32 %v2065, 0.0
    %v2126 = vmax.f32 %v2070, 0.0
    %v2127 = vmax.f32 %v2073, 0.0
    %v2128 = vmax.f32 %v2078, 0.0
    %v2129 = vmax.f32 %v2081, 0.0
    %v2130 = vmax.f32 %v2086, 0.0
    %v2131 = vmax.f32 %v2089, 0.0
    %v2132 = vmax.f32 %v2094, 0.0
    %v2133 = vmax.f32 %v2097, 0.0
    %v2134 = vmax.f32 %v2102, 0.0
    %v2135 = vmax.f32 %v2105, 0.0
    %v2136 = vmax.f32 %v2110, 0.0
    %v2137 = vmax.f32 %v2113, 0.0
    %v2138 = vmax.f32 %v2118, 0.0
    %v2139 = vmax.f32 %v2121, 0.0
    %v2140 = vpack.c.bf16 %v2125, %v2124
    %v2141 = vpack.c.bf16 %v2127, %v2126
    %v2142 = vpack.c.bf16 %v2129, %v2128
    %v2143 = vpack.c.bf16 %v2131, %v2130
    %v2144 = vpack.c.bf16 %v2133, %v2132
    %v2145 = vpack.c.bf16 %v2135, %v2134
    %v2146 = vpack.c.bf16 %v2137, %v2136
    %v2147 = vpack.c.bf16 %v2139, %v2138
    %v2148 = vld [vmem:[%s20] sm:$0xf]
    %v2149 = vld [vmem:[%s20 + $0x4] sm:$0xf]
    %v2150 = vld [vmem:[%s20 + $0x8] sm:$0xf]
    %v2151 = vld [vmem:[%s20 + $0xc] sm:$0xf]
    %v2152 = vld [vmem:[%s21] sm:$0x1]
    %v2154 = vlaneseq
    %v2155 = vshrl.u32 %v2154, 7
    %v2156 = vsub.s32 0, %v2155
    %v2157 = vrot.slane %v2152, %v2156
    %v2163 = vunpack.c.l.b16 %v2148
    %v2164 = vunpack.c.l.b16 %v2149
    %v2165 = vunpack.c.l.b16 %v2150
    %v2166 = vunpack.c.l.b16 %v2151
    %v2167 = vpack.c.b16 %v2164, %v2163
    %v2168 = vpack.c.b16 %v2166, %v2165
    %vm2171 = vcmask 261120
    %v2173 = vsel %vm2171, %v2140, 0
    %v2176 = vsel %vm2171, %v2141, 0
    %v2179 = vsel %vm2171, %v2142, 0
    %v2182 = vsel %vm2171, %v2143, 0
    %v2185 = vsel %vm2171, %v2144, 0
    %v2188 = vsel %vm2171, %v2145, 0
    %v2191 = vsel %vm2171, %v2146, 0
    %v2194 = vsel %vm2171, %v2147, 0
    %2196 = vmatprep.subr.bf16.mxu0 0
    %2197 = vmatpush1.bf16.msra.mxu0 %v2167
    %2198 = vmatprep.subr.bf16.mxu0 0
    %2199 = vmatpush1.bf16.msra.mxu0 %v2168
    %2200 = vmatprep.subr.bf16.mxu0 0
    %2201 = vmatpush1.bf16.msra.mxu0 0
    %2202 = vmatprep.subr.bf16.mxu0 0
    %2203 = vmatpush1.bf16.msra.mxu0 0
    %2204 = vmatprep.subr.bf16.mxu0 0
    %2205 = vmatpush1.bf16.msra.mxu0 0
    %2206 = vmatprep.subr.bf16.mxu0 0
    %2207 = vmatpush1.bf16.msra.mxu0 0
    %2208 = vmatprep.subr.bf16.mxu0 0
    %2209 = vmatpush1.bf16.msra.mxu0 0
    %2210 = vmatprep.subr.bf16.mxu0 0
    %2211 = vmatpush1.bf16.msra.mxu0 0
    %2212 = vmatprep.subr.bf16.mxu0 0
    %2213 = vmatpush1.bf16.msra.mxu0 0
    %2214 = vmatprep.subr.bf16.mxu0 0
    %2215 = vmatpush1.bf16.msra.mxu0 0
    %2216 = vmatprep.subr.bf16.mxu0 0
    %2217 = vmatpush1.bf16.msra.mxu0 0
    %2218 = vmatprep.subr.bf16.mxu0 0
    %2219 = vmatpush1.bf16.msra.mxu0 0
    %2220 = vmatprep.subr.bf16.mxu0 0
    %2221 = vmatpush1.bf16.msra.mxu0 0
    %2222 = vmatprep.subr.bf16.mxu0 0
    %2223 = vmatpush1.bf16.msra.mxu0 0
    %2224 = vmatprep.subr.bf16.mxu0 0
    %2225 = vmatpush1.bf16.msra.mxu0 0
    %2226 = vmatprep.subr.bf16.mxu0 0
    %2227 = vmatpush1.bf16.msra.mxu0 0
    %2228 = vmatprep.mubr.bf16.mxu0 0
    %2229 = vmatmul.mubr.bf16.gmra.mrb[0].mxu0 %v2173
    %v2230 = vpop.f32.mrb[0].mxu0
    %v2231 = vadd.f32 %v2157, %v2230
    %v2232 = vpop.f32.mrb[0].mxu0
    %v2233 = vpop.f32.mrb[0].mxu0
    %v2234 = vadd.f32 %v2157, %v2233
    %v2235 = vpop.f32.mrb[0].mxu0
    %2236 = vmatprep.mubr.bf16.mxu0 0
    %2237 = vmatmul.mubr.bf16.gmra.mrb[0].mxu0 %v2176
    %v2238 = vpop.f32.mrb[0].mxu0
    %v2239 = vadd.f32 %v2157, %v2238
    %v2240 = vpop.f32.mrb[0].mxu0
    %v2241 = vpop.f32.mrb[0].mxu0
    %v2242 = vadd.f32 %v2157, %v2241
    %v2243 = vpop.f32.mrb[0].mxu0
    %2244 = vmatprep.mubr.bf16.mxu0 0
    %2245 = vmatmul.mubr.bf16.gmra.mrb[0].mxu0 %v2179
    %v2246 = vpop.f32.mrb[0].mxu0
    %v2247 = vadd.f32 %v2157, %v2246
    %v2248 = vpop.f32.mrb[0].mxu0
    %v2249 = vpop.f32.mrb[0].mxu0
    %v2250 = vadd.f32 %v2157, %v2249
    %v2251 = vpop.f32.mrb[0].mxu0
    %2252 = vmatprep.mubr.bf16.mxu0 0
    %2253 = vmatmul.mubr.bf16.gmra.mrb[0].mxu0 %v2182
    %v2254 = vpop.f32.mrb[0].mxu0
    %v2255 = vadd.f32 %v2157, %v2254
    %v2256 = vpop.f32.mrb[0].mxu0
    %v2257 = vpop.f32.mrb[0].mxu0
    %v2258 = vadd.f32 %v2157, %v2257
    %v2259 = vpop.f32.mrb[0].mxu0
    %2260 = vmatprep.mubr.bf16.mxu0 0
    %2261 = vmatmul.mubr.bf16.gmra.mrb[0].mxu0 %v2185
    %v2262 = vpop.f32.mrb[0].mxu0
    %v2263 = vadd.f32 %v2157, %v2262
    %v2264 = vpop.f32.mrb[0].mxu0
    %v2265 = vpop.f32.mrb[0].mxu0
    %v2266 = vadd.f32 %v2157, %v2265
    %v2267 = vpop.f32.mrb[0].mxu0
    %2268 = vmatprep.mubr.bf16.mxu0 0
    %2269 = vmatmul.mubr.bf16.gmra.mrb[0].mxu0 %v2188
    %v2270 = vpop.f32.mrb[0].mxu0
    %v2271 = vadd.f32 %v2157, %v2270
    %v2272 = vpop.f32.mrb[0].mxu0
    %v2273 = vpop.f32.mrb[0].mxu0
    %v2274 = vadd.f32 %v2157, %v2273
    %v2275 = vpop.f32.mrb[0].mxu0
    %2276 = vmatprep.mubr.bf16.mxu0 0
    %2277 = vmatmul.mubr.bf16.gmra.mrb[0].mxu0 %v2191
    %v2278 = vpop.f32.mrb[0].mxu0
    %v2279 = vadd.f32 %v2157, %v2278
    %v2280 = vpop.f32.mrb[0].mxu0
    %v2281 = vpop.f32.mrb[0].mxu0
    %v2282 = vadd.f32 %v2157, %v2281
    %v2283 = vpop.f32.mrb[0].mxu0
    %2284 = vmatprep.mubr.bf16.mxu0 0
    %2285 = vmatmul.mubr.bf16.gmra.mrb[0].mxu0 %v2194
    %v2286 = vpop.f32.mrb[0].mxu0
    %v2287 = vadd.f32 %v2157, %v2286
    %v2288 = vpop.f32.mrb[0].mxu0
    %v2289 = vpop.f32.mrb[0].mxu0
    %v2290 = vadd.f32 %v2157, %v2289
    %v2291 = vpop.f32.mrb[0].mxu0
    %2292 = vdwg.mxu0
    %v2293 = vmax.f32 %v2231, 0.0
    %v2294 = vmax.f32 %v2234, 0.0
    %v2295 = vmax.f32 %v2239, 0.0
    %v2296 = vmax.f32 %v2242, 0.0
    %v2297 = vmax.f32 %v2247, 0.0
    %v2298 = vmax.f32 %v2250, 0.0
    %v2299 = vmax.f32 %v2255, 0.0
    %v2300 = vmax.f32 %v2258, 0.0
    %v2301 = vmax.f32 %v2263, 0.0
    %v2302 = vmax.f32 %v2266, 0.0
    %v2303 = vmax.f32 %v2271, 0.0
    %v2304 = vmax.f32 %v2274, 0.0
    %v2305 = vmax.f32 %v2279, 0.0
    %v2306 = vmax.f32 %v2282, 0.0
    %v2307 = vmax.f32 %v2287, 0.0
    %v2308 = vmax.f32 %v2290, 0.0
    %v2309 = vpack.c.bf16 %v2294, %v2293
    %v2310 = vpack.c.bf16 %v2296, %v2295
    %v2311 = vpack.c.bf16 %v2298, %v2297
    %v2312 = vpack.c.bf16 %v2300, %v2299
    %v2313 = vpack.c.bf16 %v2302, %v2301
    %v2314 = vpack.c.bf16 %v2304, %v2303
    %v2315 = vpack.c.bf16 %v2306, %v2305
    %v2316 = vpack.c.bf16 %v2308, %v2307
    %v2317 = vld [vmem:[%s22] sm:$0xf]
    %v2318 = vld [vmem:[%s22 + $0x4] sm:$0xf]
    %v2319 = vld [vmem:[%s23] sm:$0x1]
    %v2321 = vlaneseq
    %v2322 = vshrl.u32 %v2321, 7
    %v2323 = vsub.s32 0, %v2322
    %v2324 = vrot.slane %v2319, %v2323
    %v2328 = vunpack.c.l.b16 %v2317
    %v2329 = vunpack.c.l.b16 %v2318
    %v2330 = vpack.c.b16 %v2329, %v2328
    %vm2332 = vcmask 130048
    %v2334 = vsel %vm2332, %v2309, 0
    %v2337 = vsel %vm2332, %v2310, 0
    %v2340 = vsel %vm2332, %v2311, 0
    %v2343 = vsel %vm2332, %v2312, 0
    %v2346 = vsel %vm2332, %v2313, 0
    %v2349 = vsel %vm2332, %v2314, 0
    %v2352 = vsel %vm2332, %v2315, 0
    %v2355 = vsel %vm2332, %v2316, 0
    %2357 = vmatprep.subr.bf16.mxu0 0
    %2358 = vmatpush1.bf16.msra.mxu0 %v2330
    %2359 = vmatprep.subr.bf16.mxu0 0
    %2360 = vmatpush1.bf16.msra.mxu0 0
    %2361 = vmatprep.subr.bf16.mxu0 0
    %2362 = vmatpush1.bf16.msra.mxu0 0
    %2363 = vmatprep.subr.bf16.mxu0 0
    %2364 = vmatpush1.bf16.msra.mxu0 0
    %2365 = vmatprep.subr.bf16.mxu0 0
    %2366 = vmatpush1.bf16.msra.mxu0 0
    %2367 = vmatprep.subr.bf16.mxu0 0
    %2368 = vmatpush1.bf16.msra.mxu0 0
    %2369 = vmatprep.subr.bf16.mxu0 0
    %2370 = vmatpush1.bf16.msra.mxu0 0
    %2371 = vmatprep.subr.bf16.mxu0 0
    %2372 = vmatpush1.bf16.msra.mxu0 0
    %2373 = vmatprep.subr.bf16.mxu0 0
    %2374 = vmatpush1.bf16.msra.mxu0 0
    %2375 = vmatprep.subr.bf16.mxu0 0
    %2376 = vmatpush1.bf16.msra.mxu0 0
    %2377 = vmatprep.subr.bf16.mxu0 0
    %2378 = vmatpush1.bf16.msra.mxu0 0
    %2379 = vmatprep.subr.bf16.mxu0 0
    %2380 = vmatpush1.bf16.msra.mxu0 0
    %2381 = vmatprep.subr.bf16.mxu0 0
    %2382 = vmatpush1.bf16.msra.mxu0 0
    %2383 = vmatprep.subr.bf16.mxu0 0
    %2384 = vmatpush1.bf16.msra.mxu0 0
    %2385 = vmatprep.subr.bf16.mxu0 0
    %2386 = vmatpush1.bf16.msra.mxu0 0
    %2387 = vmatprep.subr.bf16.mxu0 0
    %2388 = vmatpush1.bf16.msra.mxu0 0
    %2389 = vmatprep.mubr.bf16.mxu0 0
    %2390 = vmatmul.mubr.bf16.gmra.mrb[0].mxu0 %v2334
    %v2391 = vpop.f32.mrb[0].mxu0
    %v2392 = vadd.f32 %v2324, %v2391
    %v2393 = vpop.f32.mrb[0].mxu0
    %v2394 = vpop.f32.mrb[0].mxu0
    %v2395 = vadd.f32 %v2324, %v2394
    %v2396 = vpop.f32.mrb[0].mxu0
    %2397 = vmatprep.mubr.bf16.mxu0 0
    %2398 = vmatmul.mubr.bf16.gmra.mrb[0].mxu0 %v2337
    %v2399 = vpop.f32.mrb[0].mxu0
    %v2400 = vadd.f32 %v2324, %v2399
    %v2401 = vpop.f32.mrb[0].mxu0
    %v2402 = vpop.f32.mrb[0].mxu0
    %v2403 = vadd.f32 %v2324, %v2402
    %v2404 = vpop.f32.mrb[0].mxu0
    %2405 = vmatprep.mubr.bf16.mxu0 0
    %2406 = vmatmul.mubr.bf16.gmra.mrb[0].mxu0 %v2340
    %v2407 = vpop.f32.mrb[0].mxu0
    %v2408 = vadd.f32 %v2324, %v2407
    %v2409 = vpop.f32.mrb[0].mxu0
    %v2410 = vpop.f32.mrb[0].mxu0
    %v2411 = vadd.f32 %v2324, %v2410
    %v2412 = vpop.f32.mrb[0].mxu0
    %2413 = vmatprep.mubr.bf16.mxu0 0
    %2414 = vmatmul.mubr.bf16.gmra.mrb[0].mxu0 %v2343
    %v2415 = vpop.f32.mrb[0].mxu0
    %v2416 = vadd.f32 %v2324, %v2415
    %v2417 = vpop.f32.mrb[0].mxu0
    %v2418 = vpop.f32.mrb[0].mxu0
    %v2419 = vadd.f32 %v2324, %v2418
    %v2420 = vpop.f32.mrb[0].mxu0
    %2421 = vmatprep.mubr.bf16.mxu0 0
    %2422 = vmatmul.mubr.bf16.gmra.mrb[0].mxu0 %v2346
    %v2423 = vpop.f32.mrb[0].mxu0
    %v2424 = vadd.f32 %v2324, %v2423
    %v2425 = vpop.f32.mrb[0].mxu0
    %v2426 = vpop.f32.mrb[0].mxu0
    %v2427 = vadd.f32 %v2324, %v2426
    %v2428 = vpop.f32.mrb[0].mxu0
    %2429 = vmatprep.mubr.bf16.mxu0 0
    %2430 = vmatmul.mubr.bf16.gmra.mrb[0].mxu0 %v2349
    %v2431 = vpop.f32.mrb[0].mxu0
    %v2432 = vadd.f32 %v2324, %v2431
    %v2433 = vpop.f32.mrb[0].mxu0
    %v2434 = vpop.f32.mrb[0].mxu0
    %v2435 = vadd.f32 %v2324, %v2434
    %v2436 = vpop.f32.mrb[0].mxu0
    %2437 = vmatprep.mubr.bf16.mxu0 0
    %2438 = vmatmul.mubr.bf16.gmra.mrb[0].mxu0 %v2352
    %v2439 = vpop.f32.mrb[0].mxu0
    %v2440 = vadd.f32 %v2324, %v2439
    %v2441 = vpop.f32.mrb[0].mxu0
    %v2442 = vpop.f32.mrb[0].mxu0
    %v2443 = vadd.f32 %v2324, %v2442
    %v2444 = vpop.f32.mrb[0].mxu0
    %2445 = vmatprep.mubr.bf16.mxu0 0
    %2446 = vmatmul.mubr.bf16.gmra.mrb[0].mxu0 %v2355
    %v2447 = vpop.f32.mrb[0].mxu0
    %v2448 = vadd.f32 %v2324, %v2447
    %v2449 = vpop.f32.mrb[0].mxu0
    %v2450 = vpop.f32.mrb[0].mxu0
    %v2451 = vadd.f32 %v2324, %v2450
    %v2452 = vpop.f32.mrb[0].mxu0
    %2453 = vdwg.mxu0
    %2454 = vst [vmem:[#allocation7] sm:$0xff] %v2392
    %2455 = vst [vmem:[#allocation7 + $0x8] sm:$0xff] %v2395
    %2456 = vst [vmem:[#allocation7 + $0x10] sm:$0xff] %v2400
    %2457 = vst [vmem:[#allocation7 + $0x18] sm:$0xff] %v2403
    %2458 = vst [vmem:[#allocation7 + $0x20] sm:$0xff] %v2408
    %2459 = vst [vmem:[#allocation7 + $0x28] sm:$0xff] %v2411
    %2460 = vst [vmem:[#allocation7 + $0x30] sm:$0xff] %v2416
    %2461 = vst [vmem:[#allocation7 + $0x38] sm:$0xff] %v2419
    %2462 = vst [vmem:[#allocation7 + $0x40] sm:$0xff] %v2424
    %2463 = vst [vmem:[#allocation7 + $0x48] sm:$0xff] %v2427
    %2464 = vst [vmem:[#allocation7 + $0x50] sm:$0xff] %v2432
    %2465 = vst [vmem:[#allocation7 + $0x58] sm:$0xff] %v2435
    %2466 = vst [vmem:[#allocation7 + $0x60] sm:$0xff] %v2440
    %2467 = vst [vmem:[#allocation7 + $0x68] sm:$0xff] %v2443
    %2468 = vst [vmem:[#allocation7 + $0x70] sm:$0xff] %v2448
    %2469 = vst [vmem:[#allocation7 + $0x78] sm:$0xff] %v2451
    // Predicated region
    $region106: #{tpu_custom_call.1} parent=1 // pred_check
      _
    $region107: #{tpu_custom_call.1} parent=1 // pred_check_branch
      %2471 = sbr.rel (0) target = $region109
    $region108: #{tpu_custom_call.1} parent=1 // pred_region
      %s2473 = ssub.s32 2048, 2048
      %2474 = vsyncadd [#allocation4], %s2473
      %s2475 = sshll.u32 [#allocation7], 4
      %s2476 = int_to_ptr.vmem [resolvable:$true] %s2475
      %2481 = dma.vmem_to_hbm [thread:$0]  %s2476, 2048, %s24, [#allocation4], 128, 128, 8
    $region109: #{tpu_custom_call.1} parent=1 // pred_fallthru
      _
    // Predicated region
    $region110: #{tpu_custom_call.1} parent=1 // pred_check
      _
    $region111: #{tpu_custom_call.1} parent=1 // pred_check_branch
      %2483 = sbr.rel (0) target = $region113
    $region112: #{tpu_custom_call.1} parent=1 // pred_region
      %2484 = dma.done [#allocation4], 2048
    $region113: #{tpu_custom_call.1} parent=1 // pred_fallthru
      _
    %2485 = vsyncpa [#allocation3], 1
    %2486 = vsyncpa [#allocation6], 1
    %2487 = vsyncpa [#allocation4], 1

</llo_original>
